<compile_context>
chip_gen: v6e
topology: v6e:2x2x1
jax: 0.10.0
libtpu: 0.0.40
codegen_flags: <defaults>
</compile_context>

<pallas_src>
import jax
import jax.numpy as jnp
from jax.experimental import pallas as pl
from jax.experimental.pallas import tpu as pltpu

LANES = 128


def _round_up(n, m):
    return ((n + m - 1) // m) * m


def _round_u8(v):
    # emulate cv2/albumentations uint8 saturate cast (round-half-up variant)
    return jnp.clip(jnp.floor(v + 0.5), 0.0, 255.0)


# --------------------------------------------------------------------------
# Pallas kernel: one (3, TILE_ROWS, 128) pixel tile per grid step.
# --------------------------------------------------------------------------
def _color_jitter_kernel(params_ref, x_ref, o_ref, work_ref):
    # params_ref : SMEM f32[20]            scalar augmentation parameters
    # x_ref      : VMEM f32[3, T, 128]     input tile in [0, 1]
    # o_ref      : VMEM f32[3, T, 128]     output tile in [0, 1]
    # work_ref   : VMEM f32[3, T, 128]     scratch holding current uint8-ish RGB
    p = params_ref

    x = x_ref[...]                                        # (3, T, 128)
    u = jnp.floor(jnp.clip(x, 0.0, 1.0) * 255.0)          # emulate uint8 cast

    # ---- 1. RandomBrightnessContrast (brightness_by_max=False) ------------
    alpha = p[0]                                          # contrast gain
    beta = p[1]                                           # brightness (frac of mean)
    mean_val = p[19]                                      # hoisted global mean
    u = _round_u8(u * alpha + beta * mean_val)

    r = u[0]                                              # (T, 128)
    g = u[1]
    b = u[2]

    # ---- 2. HueSaturationValue --------------------------------------------
    hue_shift = p[2] * 2.0                                # cv2 hue units -> degrees
    sat_shift = p[3]
    val_shift = p[4]

    maxc = jnp.maximum(jnp.maximum(r, g), b)
    minc = jnp.minimum(jnp.minimum(r, g), b)
    delta = maxc - minc
    safe_delta = jnp.where(delta == 0.0, 1.0, delta)
    inv_delta = pl.reciprocal(safe_delta, approx=True)
    h = jnp.where(maxc == r, (g - b) * inv_delta,
        jnp.where(maxc == g, 2.0 + (b - r) * inv_delta,
                  4.0 + (r - g) * inv_delta)) * 60.0
    h = jnp.where(h < 0.0, h + 360.0, h)                  # h in [-60, 360) -> [0, 360)
    h = jnp.where(delta == 0.0, 0.0, h)
    inv_maxc = pl.reciprocal(jnp.maximum(maxc, 1e-6), approx=True)
    s = jnp.where(maxc > 0.0, delta * inv_maxc * 255.0, 0.0)
    v = maxc

    # |hue_shift| <= 6 deg, so a bounded conditional wrap replaces jnp.mod.
    h = h + hue_shift
    h = jnp.where(h < 0.0, h + 360.0, h)
    h = jnp.where(h >= 360.0, h - 360.0, h)
    s = jnp.clip(s + sat_shift, 0.0, 255.0)
    v = jnp.clip(v + val_shift, 0.0, 255.0)

    c = v * (s * (1.0 / 255.0))
    hp = h * (1.0 / 60.0)                                 # in [0, 6)
    hp_mod2 = hp - 2.0 * jnp.floor(hp * 0.5)              # mod 2 without divide
    xq = c * (1.0 - jnp.abs(hp_mod2 - 1.0))
    m = v - c
    z = jnp.zeros_like(c)
    lt1 = hp < 1.0
    lt2 = hp < 2.0
    lt3 = hp < 3.0
    lt4 = hp < 4.0
    lt5 = hp < 5.0
    r1 = jnp.where(lt1, c, jnp.where(lt2, xq, jnp.where(lt4, z, jnp.where(lt5, xq, c))))
    g1 = jnp.where(lt1, xq, jnp.where(lt3, c, jnp.where(lt4, xq, z)))
    b1 = jnp.where(lt2, z, jnp.where(lt3, xq, jnp.where(lt5, c, xq)))
    work_ref[0, :, :] = _round_u8(r1 + m)
    work_ref[1, :, :] = _round_u8(g1 + m)
    work_ref[2, :, :] = _round_u8(b1 + m)

    # ---- 3. StainJitter (real branch; skipped entirely when flag off) ------
    @pl.when(p[5] > 0.5)
    def _stain():
        rr = work_ref[0, :, :]
        gg = work_ref[1, :, :]
        bb = work_ref[2, :, :]
        od_r = -jnp.log((rr + 1.0) * (1.0 / 256.0))
        od_g = -jnp.log((gg + 1.0) * (1.0 / 256.0))
        od_b = -jnp.log((bb + 1.0) * (1.0 / 256.0))
        a00, a01, a02 = p[6], p[7], p[8]
        a10, a11, a12 = p[9], p[10], p[11]
        a20, a21, a22 = p[12], p[13], p[14]
        odp_r = od_r * a00 + od_g * a10 + od_b * a20
        odp_g = od_r * a01 + od_g * a11 + od_b * a21
        odp_b = od_r * a02 + od_g * a12 + od_b * a22
        work_ref[0, :, :] = _round_u8(256.0 * jnp.exp(-odp_r) - 1.0)
        work_ref[1, :, :] = _round_u8(256.0 * jnp.exp(-odp_g) - 1.0)
        work_ref[2, :, :] = _round_u8(256.0 * jnp.exp(-odp_b) - 1.0)

    # ---- 4. ImageCompression (JPEG) -----------------------------------------
    # TODO(synk): JPEG encode/decode (8x8 DCT + quantization + entropy coding)
    # has no clean Pallas equivalent; applied as identity.

    # ---- 5. LABShift (real branch; skipped entirely when flag off) ----------
    @pl.when(p[15] > 0.5)
    def _lab():
        l_shift, a_shift, b_shift = p[16], p[17], p[18]
        rr = work_ref[0, :, :]
        gg = work_ref[1, :, :]
        bb = work_ref[2, :, :]

        def srgb_to_lin(cc):
            cc = cc * (1.0 / 255.0)
            hi = jnp.exp(2.4 * jnp.log(jnp.maximum((cc + 0.055) * (1.0 / 1.055), 1e-8)))
            return jnp.where(cc <= 0.04045, cc * (1.0 / 12.92), hi)

        rl = srgb_to_lin(rr)
        gl = srgb_to_lin(gg)
        bl = srgb_to_lin(bb)
        X = 0.412453 * rl + 0.357580 * gl + 0.180423 * bl
        Y = 0.212671 * rl + 0.715160 * gl + 0.072169 * bl
        Z = 0.019334 * rl + 0.119193 * gl + 0.950227 * bl
        X = X * (1.0 / 0.950456)
        Z = Z * (1.0 / 1.088754)

        def f_lab(t):
            cbrt = jnp.exp(jnp.log(jnp.maximum(t, 1e-8)) * (1.0 / 3.0))
            return jnp.where(t > 0.008856, cbrt, 7.787 * t + 16.0 / 116.0)

        fx = f_lab(X)
        fy = f_lab(Y)
        fz = f_lab(Z)
        L = 116.0 * fy - 16.0
        A_ = 500.0 * (fx - fy)
        B_ = 200.0 * (fy - fz)

        L = jnp.clip(L + l_shift, 0.0, 100.0)
        A_ = A_ + a_shift
        B_ = B_ + b_shift

        fy2 = (L + 16.0) * (1.0 / 116.0)
        fx2 = fy2 + A_ * (1.0 / 500.0)
        fz2 = fy2 - B_ * (1.0 / 200.0)

        def finv(ft):
            t3 = ft * ft * ft
            return jnp.where(t3 > 0.008856, t3, (ft - 16.0 / 116.0) * (1.0 / 7.787))

        X2 = finv(fx2) * 0.950456
        Y2 = finv(fy2)
        Z2 = finv(fz2) * 1.088754
        rl2 = 3.240479 * X2 - 1.537150 * Y2 - 0.498535 * Z2
        gl2 = -0.969256 * X2 + 1.875992 * Y2 + 0.041556 * Z2
        bl2 = 0.055648 * X2 - 0.204043 * Y2 + 1.057311 * Z2

        def lin_to_srgb(cc):
            cc = jnp.clip(cc, 0.0, 1.0)
            hi = 1.055 * jnp.exp(jnp.log(jnp.maximum(cc, 1e-8)) * (1.0 / 2.4)) - 0.055
            return jnp.where(cc <= 0.0031308, 12.92 * cc, hi) * 255.0

        work_ref[0, :, :] = _round_u8(lin_to_srgb(rl2))
        work_ref[1, :, :] = _round_u8(lin_to_srgb(gl2))
        work_ref[2, :, :] = _round_u8(lin_to_srgb(bl2))

    # ---- back to float [0, 1]; one dense (3, T, 128) store -------------------
    o_ref[...] = (work_ref[...] * (1.0 / 255.0)).astype(o_ref.dtype)


# --------------------------------------------------------------------------
# Wrapper: deterministic parameter sampling + tiling + pallas_call
# --------------------------------------------------------------------------
def neuropath_virchow_color_jitter(x, key,
                                   brightness_range=(0.95, 1.05),
                                   hue_range=3, saturation_range=3, value_range=3,
                                   stain_rotation_range=3.0, stain_magnitude_range=0.03,
                                   lab_l_range=(-10.0, 10.0),
                                   lab_a_range=(-3.0, 3.0), lab_b_range=(-3.0, 3.0),
                                   p_stain=0.7, p_jpeg=0.3, p_lab=0.6,
                                   tile_rows=256):
    C, H, W = x.shape
    assert C == 3, "expected a 3-channel (C, H, W) image"
    HW = H * W
    x = x.astype(jnp.float32)

    # ---- random parameter sampling (plain-JAX glue) --------------------------
    ks = jax.random.split(key, 13)
    limit = abs(brightness_range[0] - 1.0)
    alpha = 1.0 + jax.random.uniform(ks[0], (), minval=-limit, maxval=limit)
    beta = jax.random.uniform(ks[1], (), minval=-limit, maxval=limit)
    hue_shift = jax.random.uniform(ks[2], (), minval=-hue_range, maxval=hue_range)
    sat_shift = jax.random.uniform(ks[3], (), minval=-saturation_range, maxval=saturation_range)
    val_shift = jax.random.uniform(ks[4], (), minval=-value_range, maxval=value_range)

    # Stain jitter: Ruifrok H&E(+residual) OD matrix, small rotation + magnitude.
    M = jnp.array([[0.65, 0.70, 0.29],
                   [0.07, 0.99, 0.11],
                   [0.27, 0.57, 0.78]], dtype=jnp.float32)
    theta = jnp.deg2rad(jax.random.uniform(
        ks[5], (), minval=-stain_rotation_range, maxval=stain_rotation_range))
    mag = jax.random.uniform(ks[6], (), minval=-stain_magnitude_range,
                             maxval=stain_magnitude_range)
    ct, st = jnp.cos(theta), jnp.sin(theta)
    Rz = jnp.eye(3, dtype=jnp.float32)
    Rz = Rz.at[0, 0].set(ct).at[0, 1].set(-st).at[1, 0].set(st).at[1, 1].set(ct)
    M_pert = (M @ Rz) * (1.0 + mag)
    A = jnp.linalg.inv(M) @ M_pert                        # combined 3x3 (glue)

    stain_flag = (jax.random.uniform(ks[7], ()) < p_stain).astype(jnp.float32)
    _jpeg_flag = (jax.random.uniform(ks[8], ()) < p_jpeg)  # unused (JPEG = identity)
    lab_flag = (jax.random.uniform(ks[9], ()) < p_lab).astype(jnp.float32)
    l_shift = jax.random.uniform(ks[10], (), minval=lab_l_range[0], maxval=lab_l_range[1])
    a_shift = jax.random.uniform(ks[11], (), minval=lab_a_range[0], maxval=lab_a_range[1])
    b_shift = jax.random.uniform(ks[12], (), minval=lab_b_range[0], maxval=lab_b_range[1])

    # Brightness mean hoisted out of the kernel; computed over the uint8-emulated
    # image (floor(clip(x,0,1)*255)) so semantics match the in-kernel version.
    mean_val = jnp.mean(jnp.floor(jnp.clip(x, 0.0, 1.0) * 255.0))

    params = jnp.concatenate([
        jnp.stack([alpha, beta, hue_shift, sat_shift, val_shift, stain_flag]),
        A.reshape(-1),
        jnp.stack([lab_flag, l_shift, a_shift, b_shift, mean_val]),
    ]).astype(jnp.float32)                                # f32[20]

    # ---- layout: (3, rows_p, 128), channel on >=8 sublanes, pixels on lanes --
    rows = -(-HW // LANES)                                # ceil(HW / 128)
    t = min(int(tile_rows), _round_up(rows, 8))           # tile rows, multiple of 8
    rows_p = _round_up(rows, t)
    num_tiles = rows_p // t

    x2 = x.reshape(3, HW)
    total_pad = rows_p * LANES - HW
    if total_pad:
        x2 = jnp.pad(x2, ((0, 0), (0, total_pad)))        # pad pixels; discarded later
    x3 = x2.reshape(3, rows_p, LANES)

    out = pl.pallas_call(
        _color_jitter_kernel,
        out_shape=jax.ShapeDtypeStruct((3, rows_p, LANES), jnp.float32),
        grid=(num_tiles,),
        in_specs=[
            pl.BlockSpec(memory_space=pltpu.MemorySpace.SMEM),        # scalar params
            pl.BlockSpec((3, t, LANES), lambda i: (0, i, 0)),          # image tile
        ],
        out_specs=pl.BlockSpec((3, t, LANES), lambda i: (0, i, 0)),
        scratch_shapes=[pltpu.VMEM((3, t, LANES), jnp.float32)],
        compiler_params=pltpu.CompilerParams(
            dimension_semantics=("parallel",)),                        # megacore on v7x
    )(params, x3)

    out = out.reshape(3, rows_p * LANES)[:, :HW].reshape(3, H, W)
    return out


if __name__ == "__main__":
    key = jax.random.PRNGKey(0)
    k_img, k_aug = jax.random.split(key)
    # Module expects a 3-D (C, H, W) float tensor in [0, 1].
    x = jax.random.uniform(k_img, (3, 16, 16), dtype=jnp.float32)
    y = neuropath_virchow_color_jitter(x, k_aug)
    y = jax.block_until_ready(y)
    assert y.shape == (3, 16, 16) and y.dtype == jnp.float32
    assert bool(jnp.all(jnp.isfinite(y)))
    assert bool(jnp.all((y >= 0.0) & (y <= 1.0)))
    print("KERNEL_OK")
</pallas_src>

<mosaic_0001>
module attributes {stable_mosaic.version = 11 : i64} {
  func.func @_color_jitter_kernel(%arg0: i32, %arg1: memref<20xf32, #tpu.memory_space<smem>>, %arg2: memref<3x8x128xf32, #tpu.memory_space<vmem>>, %arg3: memref<3x8x128xf32, #tpu.memory_space<vmem>>, %arg4: memref<3x8x128xf32, #tpu.memory_space<vmem>>) attributes {dimension_semantics = [#tpu.dimension_semantics<parallel>], iteration_bounds = array<i64: 1>, scalar_prefetch = 0 : i64, scratch_operands = 1 : i64, tpu.core_type = #tpu.core_type<tc>, window_params = [{transform_indices = @transform_0, window_bounds = array<i64: 20>}, {transform_indices = @transform_1, window_bounds = array<i64: 3, 8, 128>}, {transform_indices = @transform_2, window_bounds = array<i64: 3, 8, 128>}]} {
    %c0 = arith.constant 0 : index
    %c0_0 = arith.constant 0 : index
    %c0_1 = arith.constant 0 : index
    %0 = vector.load %arg2[%c0, %c0_0, %c0_1] : memref<3x8x128xf32, #tpu.memory_space<vmem>>, vector<3x8x128xf32>
    %cst = arith.constant 0.000000e+00 : f32
    %cst_2 = arith.constant 1.000000e+00 : f32
    %1 = vector.broadcast %cst : f32 to vector<3x8x128xf32>
    %2 = arith.maximumf %1, %0 : vector<3x8x128xf32>
    %3 = vector.broadcast %cst_2 : f32 to vector<3x8x128xf32>
    %4 = arith.minimumf %3, %2 : vector<3x8x128xf32>
    %cst_3 = arith.constant 2.550000e+02 : f32
    %5 = vector.broadcast %cst_3 : f32 to vector<3x8x128xf32>
    %6 = arith.mulf %4, %5 : vector<3x8x128xf32>
    %7 = math.floor %6 : vector<3x8x128xf32>
    %c0_4 = arith.constant 0 : index
    %8 = memref.load %arg1[%c0_4] : memref<20xf32, #tpu.memory_space<smem>>
    %c1 = arith.constant 1 : index
    %9 = memref.load %arg1[%c1] : memref<20xf32, #tpu.memory_space<smem>>
    %c19 = arith.constant 19 : index
    %10 = memref.load %arg1[%c19] : memref<20xf32, #tpu.memory_space<smem>>
    %11 = vector.broadcast %8 : f32 to vector<3x8x128xf32>
    %12 = arith.mulf %7, %11 : vector<3x8x128xf32>
    %13 = arith.mulf %9, %10 : f32
    %14 = vector.broadcast %13 : f32 to vector<3x8x128xf32>
    %15 = arith.addf %12, %14 : vector<3x8x128xf32>
    %cst_5 = arith.constant 5.000000e-01 : f32
    %16 = vector.broadcast %cst_5 : f32 to vector<3x8x128xf32>
    %17 = arith.addf %15, %16 : vector<3x8x128xf32>
    %18 = math.floor %17 : vector<3x8x128xf32>
    %cst_6 = arith.constant 0.000000e+00 : f32
    %cst_7 = arith.constant 2.550000e+02 : f32
    %19 = vector.broadcast %cst_6 : f32 to vector<3x8x128xf32>
    %20 = arith.maximumf %19, %18 : vector<3x8x128xf32>
    %21 = vector.broadcast %cst_7 : f32 to vector<3x8x128xf32>
    %22 = arith.minimumf %21, %20 : vector<3x8x128xf32>
    %23 = vector.extract_strided_slice %22 {offsets = [0, 0, 0], sizes = [1, 8, 128], strides = [1, 1, 1]} : vector<3x8x128xf32> to vector<1x8x128xf32>
    %24 = vector.shape_cast %23 : vector<1x8x128xf32> to vector<8x128xf32>
    %25 = vector.extract_strided_slice %22 {offsets = [1, 0, 0], sizes = [1, 8, 128], strides = [1, 1, 1]} : vector<3x8x128xf32> to vector<1x8x128xf32>
    %26 = vector.shape_cast %25 : vector<1x8x128xf32> to vector<8x128xf32>
    %27 = vector.extract_strided_slice %22 {offsets = [2, 0, 0], sizes = [1, 8, 128], strides = [1, 1, 1]} : vector<3x8x128xf32> to vector<1x8x128xf32>
    %28 = vector.shape_cast %27 : vector<1x8x128xf32> to vector<8x128xf32>
    %c2 = arith.constant 2 : index
    %29 = memref.load %arg1[%c2] : memref<20xf32, #tpu.memory_space<smem>>
    %cst_8 = arith.constant 2.000000e+00 : f32
    %30 = arith.mulf %29, %cst_8 : f32
    %c3 = arith.constant 3 : index
    %31 = memref.load %arg1[%c3] : memref<20xf32, #tpu.memory_space<smem>>
    %c4 = arith.constant 4 : index
    %32 = memref.load %arg1[%c4] : memref<20xf32, #tpu.memory_space<smem>>
    %33 = arith.maximumf %24, %26 : vector<8x128xf32>
    %34 = arith.maximumf %33, %28 : vector<8x128xf32>
    %35 = arith.minimumf %24, %26 : vector<8x128xf32>
    %36 = arith.minimumf %35, %28 : vector<8x128xf32>
    %37 = arith.subf %34, %36 : vector<8x128xf32>
    %cst_9 = arith.constant 0.000000e+00 : f32
    %38 = vector.broadcast %cst_9 : f32 to vector<8x128xf32>
    %39 = arith.cmpf oeq, %37, %38 : vector<8x128xf32>
    %cst_10 = arith.constant 1.000000e+00 : f32
    %40 = vector.broadcast %cst_10 : f32 to vector<8x128xf32>
    %41 = arith.select %39, %40, %37 : vector<8x128xi1>, vector<8x128xf32>
    %42 = tpu.reciprocal %41 {approx = true} : vector<8x128xf32> -> vector<8x128xf32>
    %43 = arith.cmpf oeq, %34, %24 : vector<8x128xf32>
    %44 = arith.subf %26, %28 : vector<8x128xf32>
    %45 = arith.mulf %44, %42 : vector<8x128xf32>
    %46 = arith.cmpf oeq, %34, %26 : vector<8x128xf32>
    %47 = arith.subf %28, %24 : vector<8x128xf32>
    %48 = arith.mulf %47, %42 : vector<8x128xf32>
    %cst_11 = arith.constant 2.000000e+00 : f32
    %49 = vector.broadcast %cst_11 : f32 to vector<8x128xf32>
    %50 = arith.addf %49, %48 : vector<8x128xf32>
    %51 = arith.subf %24, %26 : vector<8x128xf32>
    %52 = arith.mulf %51, %42 : vector<8x128xf32>
    %cst_12 = arith.constant 4.000000e+00 : f32
    %53 = vector.broadcast %cst_12 : f32 to vector<8x128xf32>
    %54 = arith.addf %53, %52 : vector<8x128xf32>
    %55 = arith.select %46, %50, %54 : vector<8x128xi1>, vector<8x128xf32>
    %56 = arith.select %43, %45, %55 : vector<8x128xi1>, vector<8x128xf32>
    %cst_13 = arith.constant 6.000000e+01 : f32
    %57 = vector.broadcast %cst_13 : f32 to vector<8x128xf32>
    %58 = arith.mulf %56, %57 : vector<8x128xf32>
    %cst_14 = arith.constant 0.000000e+00 : f32
    %59 = vector.broadcast %cst_14 : f32 to vector<8x128xf32>
    %60 = arith.cmpf olt, %58, %59 : vector<8x128xf32>
    %cst_15 = arith.constant 3.600000e+02 : f32
    %61 = vector.broadcast %cst_15 : f32 to vector<8x128xf32>
    %62 = arith.addf %58, %61 : vector<8x128xf32>
    %63 = arith.select %60, %62, %58 : vector<8x128xi1>, vector<8x128xf32>
    %cst_16 = arith.constant 0.000000e+00 : f32
    %64 = vector.broadcast %cst_16 : f32 to vector<8x128xf32>
    %65 = arith.cmpf oeq, %37, %64 : vector<8x128xf32>
    %cst_17 = arith.constant 0.000000e+00 : f32
    %66 = vector.broadcast %cst_17 : f32 to vector<8x128xf32>
    %67 = arith.select %65, %66, %63 : vector<8x128xi1>, vector<8x128xf32>
    %cst_18 = arith.constant 9.99999997E-7 : f32
    %68 = vector.broadcast %cst_18 : f32 to vector<8x128xf32>
    %69 = arith.maximumf %34, %68 : vector<8x128xf32>
    %70 = tpu.reciprocal %69 {approx = true} : vector<8x128xf32> -> vector<8x128xf32>
    %cst_19 = arith.constant 0.000000e+00 : f32
    %71 = vector.broadcast %cst_19 : f32 to vector<8x128xf32>
    %72 = arith.cmpf ogt, %34, %71 : vector<8x128xf32>
    %73 = arith.mulf %37, %70 : vector<8x128xf32>
    %cst_20 = arith.constant 2.550000e+02 : f32
    %74 = vector.broadcast %cst_20 : f32 to vector<8x128xf32>
    %75 = arith.mulf %73, %74 : vector<8x128xf32>
    %cst_21 = arith.constant 0.000000e+00 : f32
    %76 = vector.broadcast %cst_21 : f32 to vector<8x128xf32>
    %77 = arith.select %72, %75, %76 : vector<8x128xi1>, vector<8x128xf32>
    %78 = vector.broadcast %30 : f32 to vector<8x128xf32>
    %79 = arith.addf %67, %78 : vector<8x128xf32>
    %cst_22 = arith.constant 0.000000e+00 : f32
    %80 = vector.broadcast %cst_22 : f32 to vector<8x128xf32>
    %81 = arith.cmpf olt, %79, %80 : vector<8x128xf32>
    %cst_23 = arith.constant 3.600000e+02 : f32
    %82 = vector.broadcast %cst_23 : f32 to vector<8x128xf32>
    %83 = arith.addf %79, %82 : vector<8x128xf32>
    %84 = arith.select %81, %83, %79 : vector<8x128xi1>, vector<8x128xf32>
    %cst_24 = arith.constant 3.600000e+02 : f32
    %85 = vector.broadcast %cst_24 : f32 to vector<8x128xf32>
    %86 = arith.cmpf oge, %84, %85 : vector<8x128xf32>
    %cst_25 = arith.constant 3.600000e+02 : f32
    %87 = vector.broadcast %cst_25 : f32 to vector<8x128xf32>
    %88 = arith.subf %84, %87 : vector<8x128xf32>
    %89 = arith.select %86, %88, %84 : vector<8x128xi1>, vector<8x128xf32>
    %90 = vector.broadcast %31 : f32 to vector<8x128xf32>
    %91 = arith.addf %77, %90 : vector<8x128xf32>
    %cst_26 = arith.constant 0.000000e+00 : f32
    %cst_27 = arith.constant 2.550000e+02 : f32
    %92 = vector.broadcast %cst_26 : f32 to vector<8x128xf32>
    %93 = arith.maximumf %92, %91 : vector<8x128xf32>
    %94 = vector.broadcast %cst_27 : f32 to vector<8x128xf32>
    %95 = arith.minimumf %94, %93 : vector<8x128xf32>
    %96 = vector.broadcast %32 : f32 to vector<8x128xf32>
    %97 = arith.addf %34, %96 : vector<8x128xf32>
    %cst_28 = arith.constant 0.000000e+00 : f32
    %cst_29 = arith.constant 2.550000e+02 : f32
    %98 = vector.broadcast %cst_28 : f32 to vector<8x128xf32>
    %99 = arith.maximumf %98, %97 : vector<8x128xf32>
    %100 = vector.broadcast %cst_29 : f32 to vector<8x128xf32>
    %101 = arith.minimumf %100, %99 : vector<8x128xf32>
    %cst_30 = arith.constant 0.00392156886 : f32
    %102 = vector.broadcast %cst_30 : f32 to vector<8x128xf32>
    %103 = arith.mulf %95, %102 : vector<8x128xf32>
    %104 = arith.mulf %101, %103 : vector<8x128xf32>
    %cst_31 = arith.constant 0.0166666675 : f32
    %105 = vector.broadcast %cst_31 : f32 to vector<8x128xf32>
    %106 = arith.mulf %89, %105 : vector<8x128xf32>
    %cst_32 = arith.constant 5.000000e-01 : f32
    %107 = vector.broadcast %cst_32 : f32 to vector<8x128xf32>
    %108 = arith.mulf %106, %107 : vector<8x128xf32>
    %109 = math.floor %108 : vector<8x128xf32>
    %cst_33 = arith.constant 2.000000e+00 : f32
    %110 = vector.broadcast %cst_33 : f32 to vector<8x128xf32>
    %111 = arith.mulf %110, %109 : vector<8x128xf32>
    %112 = arith.subf %106, %111 : vector<8x128xf32>
    %cst_34 = arith.constant 1.000000e+00 : f32
    %113 = vector.broadcast %cst_34 : f32 to vector<8x128xf32>
    %114 = arith.subf %112, %113 : vector<8x128xf32>
    %115 = math.absf %114 : vector<8x128xf32>
    %cst_35 = arith.constant 1.000000e+00 : f32
    %116 = vector.broadcast %cst_35 : f32 to vector<8x128xf32>
    %117 = arith.subf %116, %115 : vector<8x128xf32>
    %118 = arith.mulf %104, %117 : vector<8x128xf32>
    %119 = arith.subf %101, %104 : vector<8x128xf32>
    %cst_36 = arith.constant 0.000000e+00 : f32
    %120 = vector.broadcast %cst_36 : f32 to vector<8x128xf32>
    %cst_37 = arith.constant 1.000000e+00 : f32
    %121 = vector.broadcast %cst_37 : f32 to vector<8x128xf32>
    %122 = arith.cmpf olt, %106, %121 : vector<8x128xf32>
    %cst_38 = arith.constant 2.000000e+00 : f32
    %123 = vector.broadcast %cst_38 : f32 to vector<8x128xf32>
    %124 = arith.cmpf olt, %106, %123 : vector<8x128xf32>
    %cst_39 = arith.constant 3.000000e+00 : f32
    %125 = vector.broadcast %cst_39 : f32 to vector<8x128xf32>
    %126 = arith.cmpf olt, %106, %125 : vector<8x128xf32>
    %cst_40 = arith.constant 4.000000e+00 : f32
    %127 = vector.broadcast %cst_40 : f32 to vector<8x128xf32>
    %128 = arith.cmpf olt, %106, %127 : vector<8x128xf32>
    %cst_41 = arith.constant 5.000000e+00 : f32
    %129 = vector.broadcast %cst_41 : f32 to vector<8x128xf32>
    %130 = arith.cmpf olt, %106, %129 : vector<8x128xf32>
    %131 = arith.select %130, %118, %104 : vector<8x128xi1>, vector<8x128xf32>
    %132 = arith.select %128, %120, %131 : vector<8x128xi1>, vector<8x128xf32>
    %133 = arith.select %124, %118, %132 : vector<8x128xi1>, vector<8x128xf32>
    %134 = arith.select %122, %104, %133 : vector<8x128xi1>, vector<8x128xf32>
    %135 = arith.select %128, %118, %120 : vector<8x128xi1>, vector<8x128xf32>
    %136 = arith.select %126, %104, %135 : vector<8x128xi1>, vector<8x128xf32>
    %137 = arith.select %122, %118, %136 : vector<8x128xi1>, vector<8x128xf32>
    %138 = arith.select %130, %104, %118 : vector<8x128xi1>, vector<8x128xf32>
    %139 = arith.select %126, %118, %138 : vector<8x128xi1>, vector<8x128xf32>
    %140 = arith.select %124, %120, %139 : vector<8x128xi1>, vector<8x128xf32>
    %141 = arith.addf %134, %119 : vector<8x128xf32>
    %cst_42 = arith.constant 5.000000e-01 : f32
    %142 = vector.broadcast %cst_42 : f32 to vector<8x128xf32>
    %143 = arith.addf %141, %142 : vector<8x128xf32>
    %144 = math.floor %143 : vector<8x128xf32>
    %cst_43 = arith.constant 0.000000e+00 : f32
    %cst_44 = arith.constant 2.550000e+02 : f32
    %145 = vector.broadcast %cst_43 : f32 to vector<8x128xf32>
    %146 = arith.maximumf %145, %144 : vector<8x128xf32>
    %147 = vector.broadcast %cst_44 : f32 to vector<8x128xf32>
    %148 = arith.minimumf %147, %146 : vector<8x128xf32>
    %c0_45 = arith.constant 0 : index
    %c0_46 = arith.constant 0 : index
    %c0_47 = arith.constant 0 : index
    %149 = vector.load %arg4[%c0_45, %c0_46, %c0_47] : memref<3x8x128xf32, #tpu.memory_space<vmem>>, vector<1x8x128xf32>
    %150 = vector.shape_cast %149 : vector<1x8x128xf32> to vector<8x128xf32>
    %151 = vector.shape_cast %148 : vector<8x128xf32> to vector<1x8x128xf32>
    tpu.vector_store %arg4[%c0_45, %c0_46, %c0_47], %151 {strides = array<i32>} : memref<3x8x128xf32, #tpu.memory_space<vmem>>, vector<1x8x128xf32>,
    %152 = arith.addf %137, %119 : vector<8x128xf32>
    %cst_48 = arith.constant 5.000000e-01 : f32
    %153 = vector.broadcast %cst_48 : f32 to vector<8x128xf32>
    %154 = arith.addf %152, %153 : vector<8x128xf32>
    %155 = math.floor %154 : vector<8x128xf32>
    %cst_49 = arith.constant 0.000000e+00 : f32
    %cst_50 = arith.constant 2.550000e+02 : f32
    %156 = vector.broadcast %cst_49 : f32 to vector<8x128xf32>
    %157 = arith.maximumf %156, %155 : vector<8x128xf32>
    %158 = vector.broadcast %cst_50 : f32 to vector<8x128xf32>
    %159 = arith.minimumf %158, %157 : vector<8x128xf32>
    %c1_51 = arith.constant 1 : index
    %c0_52 = arith.constant 0 : index
    %c0_53 = arith.constant 0 : index
    %160 = vector.load %arg4[%c1_51, %c0_52, %c0_53] : memref<3x8x128xf32, #tpu.memory_space<vmem>>, vector<1x8x128xf32>
    %161 = vector.shape_cast %160 : vector<1x8x128xf32> to vector<8x128xf32>
    %162 = vector.shape_cast %159 : vector<8x128xf32> to vector<1x8x128xf32>
    tpu.vector_store %arg4[%c1_51, %c0_52, %c0_53], %162 {strides = array<i32>} : memref<3x8x128xf32, #tpu.memory_space<vmem>>, vector<1x8x128xf32>,
    %163 = arith.addf %140, %119 : vector<8x128xf32>
    %cst_54 = arith.constant 5.000000e-01 : f32
    %164 = vector.broadcast %cst_54 : f32 to vector<8x128xf32>
    %165 = arith.addf %163, %164 : vector<8x128xf32>
    %166 = math.floor %165 : vector<8x128xf32>
    %cst_55 = arith.constant 0.000000e+00 : f32
    %cst_56 = arith.constant 2.550000e+02 : f32
    %167 = vector.broadcast %cst_55 : f32 to vector<8x128xf32>
    %168 = arith.maximumf %167, %166 : vector<8x128xf32>
    %169 = vector.broadcast %cst_56 : f32 to vector<8x128xf32>
    %170 = arith.minimumf %169, %168 : vector<8x128xf32>
    %c2_57 = arith.constant 2 : index
    %c0_58 = arith.constant 0 : index
    %c0_59 = arith.constant 0 : index
    %171 = vector.load %arg4[%c2_57, %c0_58, %c0_59] : memref<3x8x128xf32, #tpu.memory_space<vmem>>, vector<1x8x128xf32>
    %172 = vector.shape_cast %171 : vector<1x8x128xf32> to vector<8x128xf32>
    %173 = vector.shape_cast %170 : vector<8x128xf32> to vector<1x8x128xf32>
    tpu.vector_store %arg4[%c2_57, %c0_58, %c0_59], %173 {strides = array<i32>} : memref<3x8x128xf32, #tpu.memory_space<vmem>>, vector<1x8x128xf32>,
    %c5 = arith.constant 5 : index
    %174 = memref.load %arg1[%c5] : memref<20xf32, #tpu.memory_space<smem>>
    %cst_60 = arith.constant 5.000000e-01 : f32
    %175 = arith.cmpf ogt, %174, %cst_60 : f32
    %176 = arith.extui %175 : i1 to i32
    %c0_i32 = arith.constant 0 : i32
    %177 = arith.cmpi ne, %176, %c0_i32 : i32
    scf.if %177 {
      %c0_70 = arith.constant 0 : index
      %c0_71 = arith.constant 0 : index
      %c0_72 = arith.constant 0 : index
      %186 = vector.load %arg4[%c0_70, %c0_71, %c0_72] : memref<3x8x128xf32, #tpu.memory_space<vmem>>, vector<1x8x128xf32>
      %187 = vector.shape_cast %186 : vector<1x8x128xf32> to vector<8x128xf32>
      %c1_73 = arith.constant 1 : index
      %c0_74 = arith.constant 0 : index
      %c0_75 = arith.constant 0 : index
      %188 = vector.load %arg4[%c1_73, %c0_74, %c0_75] : memref<3x8x128xf32, #tpu.memory_space<vmem>>, vector<1x8x128xf32>
      %189 = vector.shape_cast %188 : vector<1x8x128xf32> to vector<8x128xf32>
      %c2_76 = arith.constant 2 : index
      %c0_77 = arith.constant 0 : index
      %c0_78 = arith.constant 0 : index
      %190 = vector.load %arg4[%c2_76, %c0_77, %c0_78] : memref<3x8x128xf32, #tpu.memory_space<vmem>>, vector<1x8x128xf32>
      %191 = vector.shape_cast %190 : vector<1x8x128xf32> to vector<8x128xf32>
      %cst_79 = arith.constant 1.000000e+00 : f32
      %192 = vector.broadcast %cst_79 : f32 to vector<8x128xf32>
      %193 = arith.addf %187, %192 : vector<8x128xf32>
      %cst_80 = arith.constant 3.906250e-03 : f32
      %194 = vector.broadcast %cst_80 : f32 to vector<8x128xf32>
      %195 = arith.mulf %193, %194 : vector<8x128xf32>
      %196 = math.log %195 : vector<8x128xf32>
      %cst_81 = arith.constant 0.000000e+00 : f32
      %197 = vector.broadcast %cst_81 : f32 to vector<8x128xf32>
      %198 = arith.subf %197, %196 : vector<8x128xf32>
      %cst_82 = arith.constant 1.000000e+00 : f32
      %199 = vector.broadcast %cst_82 : f32 to vector<8x128xf32>
      %200 = arith.addf %189, %199 : vector<8x128xf32>
      %cst_83 = arith.constant 3.906250e-03 : f32
      %201 = vector.broadcast %cst_83 : f32 to vector<8x128xf32>
      %202 = arith.mulf %200, %201 : vector<8x128xf32>
      %203 = math.log %202 : vector<8x128xf32>
      %cst_84 = arith.constant 0.000000e+00 : f32
      %204 = vector.broadcast %cst_84 : f32 to vector<8x128xf32>
      %205 = arith.subf %204, %203 : vector<8x128xf32>
      %cst_85 = arith.constant 1.000000e+00 : f32
      %206 = vector.broadcast %cst_85 : f32 to vector<8x128xf32>
      %207 = arith.addf %191, %206 : vector<8x128xf32>
      %cst_86 = arith.constant 3.906250e-03 : f32
      %208 = vector.broadcast %cst_86 : f32 to vector<8x128xf32>
      %209 = arith.mulf %207, %208 : vector<8x128xf32>
      %210 = math.log %209 : vector<8x128xf32>
      %cst_87 = arith.constant 0.000000e+00 : f32
      %211 = vector.broadcast %cst_87 : f32 to vector<8x128xf32>
      %212 = arith.subf %211, %210 : vector<8x128xf32>
      %c6 = arith.constant 6 : index
      %213 = memref.load %arg1[%c6] : memref<20xf32, #tpu.memory_space<smem>>
      %c7 = arith.constant 7 : index
      %214 = memref.load %arg1[%c7] : memref<20xf32, #tpu.memory_space<smem>>
      %c8 = arith.constant 8 : index
      %215 = memref.load %arg1[%c8] : memref<20xf32, #tpu.memory_space<smem>>
      %c9 = arith.constant 9 : index
      %216 = memref.load %arg1[%c9] : memref<20xf32, #tpu.memory_space<smem>>
      %c10 = arith.constant 10 : index
      %217 = memref.load %arg1[%c10] : memref<20xf32, #tpu.memory_space<smem>>
      %c11 = arith.constant 11 : index
      %218 = memref.load %arg1[%c11] : memref<20xf32, #tpu.memory_space<smem>>
      %c12 = arith.constant 12 : index
      %219 = memref.load %arg1[%c12] : memref<20xf32, #tpu.memory_space<smem>>
      %c13 = arith.constant 13 : index
      %220 = memref.load %arg1[%c13] : memref<20xf32, #tpu.memory_space<smem>>
      %c14 = arith.constant 14 : index
      %221 = memref.load %arg1[%c14] : memref<20xf32, #tpu.memory_space<smem>>
      %222 = vector.broadcast %213 : f32 to vector<8x128xf32>
      %223 = arith.mulf %198, %222 : vector<8x128xf32>
      %224 = vector.broadcast %216 : f32 to vector<8x128xf32>
      %225 = arith.mulf %205, %224 : vector<8x128xf32>
      %226 = arith.addf %223, %225 : vector<8x128xf32>
      %227 = vector.broadcast %219 : f32 to vector<8x128xf32>
      %228 = arith.mulf %212, %227 : vector<8x128xf32>
      %229 = arith.addf %226, %228 : vector<8x128xf32>
      %230 = vector.broadcast %214 : f32 to vector<8x128xf32>
      %231 = arith.mulf %198, %230 : vector<8x128xf32>
      %232 = vector.broadcast %217 : f32 to vector<8x128xf32>
      %233 = arith.mulf %205, %232 : vector<8x128xf32>
      %234 = arith.addf %231, %233 : vector<8x128xf32>
      %235 = vector.broadcast %220 : f32 to vector<8x128xf32>
      %236 = arith.mulf %212, %235 : vector<8x128xf32>
      %237 = arith.addf %234, %236 : vector<8x128xf32>
      %238 = vector.broadcast %215 : f32 to vector<8x128xf32>
      %239 = arith.mulf %198, %238 : vector<8x128xf32>
      %240 = vector.broadcast %218 : f32 to vector<8x128xf32>
      %241 = arith.mulf %205, %240 : vector<8x128xf32>
      %242 = arith.addf %239, %241 : vector<8x128xf32>
      %243 = vector.broadcast %221 : f32 to vector<8x128xf32>
      %244 = arith.mulf %212, %243 : vector<8x128xf32>
      %245 = arith.addf %242, %244 : vector<8x128xf32>
      %cst_88 = arith.constant 0.000000e+00 : f32
      %246 = vector.broadcast %cst_88 : f32 to vector<8x128xf32>
      %247 = arith.subf %246, %229 : vector<8x128xf32>
      %248 = math.exp %247 : vector<8x128xf32>
      %cst_89 = arith.constant 2.560000e+02 : f32
      %249 = vector.broadcast %cst_89 : f32 to vector<8x128xf32>
      %250 = arith.mulf %249, %248 : vector<8x128xf32>
      %cst_90 = arith.constant 1.000000e+00 : f32
      %251 = vector.broadcast %cst_90 : f32 to vector<8x128xf32>
      %252 = arith.subf %250, %251 : vector<8x128xf32>
      %cst_91 = arith.constant 5.000000e-01 : f32
      %253 = vector.broadcast %cst_91 : f32 to vector<8x128xf32>
      %254 = arith.addf %252, %253 : vector<8x128xf32>
      %255 = math.floor %254 : vector<8x128xf32>
      %cst_92 = arith.constant 0.000000e+00 : f32
      %cst_93 = arith.constant 2.550000e+02 : f32
      %256 = vector.broadcast %cst_92 : f32 to vector<8x128xf32>
      %257 = arith.maximumf %256, %255 : vector<8x128xf32>
      %258 = vector.broadcast %cst_93 : f32 to vector<8x128xf32>
      %259 = arith.minimumf %258, %257 : vector<8x128xf32>
      %c0_94 = arith.constant 0 : index
      %c0_95 = arith.constant 0 : index
      %c0_96 = arith.constant 0 : index
      %260 = vector.load %arg4[%c0_94, %c0_95, %c0_96] : memref<3x8x128xf32, #tpu.memory_space<vmem>>, vector<1x8x128xf32>
      %261 = vector.shape_cast %260 : vector<1x8x128xf32> to vector<8x128xf32>
      %262 = vector.shape_cast %259 : vector<8x128xf32> to vector<1x8x128xf32>
      tpu.vector_store %arg4[%c0_94, %c0_95, %c0_96], %262 {strides = array<i32>} : memref<3x8x128xf32, #tpu.memory_space<vmem>>, vector<1x8x128xf32>,
      %cst_97 = arith.constant 0.000000e+00 : f32
      %263 = vector.broadcast %cst_97 : f32 to vector<8x128xf32>
      %264 = arith.subf %263, %237 : vector<8x128xf32>
      %265 = math.exp %264 : vector<8x128xf32>
      %cst_98 = arith.constant 2.560000e+02 : f32
      %266 = vector.broadcast %cst_98 : f32 to vector<8x128xf32>
      %267 = arith.mulf %266, %265 : vector<8x128xf32>
      %cst_99 = arith.constant 1.000000e+00 : f32
      %268 = vector.broadcast %cst_99 : f32 to vector<8x128xf32>
      %269 = arith.subf %267, %268 : vector<8x128xf32>
      %cst_100 = arith.constant 5.000000e-01 : f32
      %270 = vector.broadcast %cst_100 : f32 to vector<8x128xf32>
      %271 = arith.addf %269, %270 : vector<8x128xf32>
      %272 = math.floor %271 : vector<8x128xf32>
      %cst_101 = arith.constant 0.000000e+00 : f32
      %cst_102 = arith.constant 2.550000e+02 : f32
      %273 = vector.broadcast %cst_101 : f32 to vector<8x128xf32>
      %274 = arith.maximumf %273, %272 : vector<8x128xf32>
      %275 = vector.broadcast %cst_102 : f32 to vector<8x128xf32>
      %276 = arith.minimumf %275, %274 : vector<8x128xf32>
      %c1_103 = arith.constant 1 : index
      %c0_104 = arith.constant 0 : index
      %c0_105 = arith.constant 0 : index
      %277 = vector.load %arg4[%c1_103, %c0_104, %c0_105] : memref<3x8x128xf32, #tpu.memory_space<vmem>>, vector<1x8x128xf32>
      %278 = vector.shape_cast %277 : vector<1x8x128xf32> to vector<8x128xf32>
      %279 = vector.shape_cast %276 : vector<8x128xf32> to vector<1x8x128xf32>
      tpu.vector_store %arg4[%c1_103, %c0_104, %c0_105], %279 {strides = array<i32>} : memref<3x8x128xf32, #tpu.memory_space<vmem>>, vector<1x8x128xf32>,
      %cst_106 = arith.constant 0.000000e+00 : f32
      %280 = vector.broadcast %cst_106 : f32 to vector<8x128xf32>
      %281 = arith.subf %280, %245 : vector<8x128xf32>
      %282 = math.exp %281 : vector<8x128xf32>
      %cst_107 = arith.constant 2.560000e+02 : f32
      %283 = vector.broadcast %cst_107 : f32 to vector<8x128xf32>
      %284 = arith.mulf %283, %282 : vector<8x128xf32>
      %cst_108 = arith.constant 1.000000e+00 : f32
      %285 = vector.broadcast %cst_108 : f32 to vector<8x128xf32>
      %286 = arith.subf %284, %285 : vector<8x128xf32>
      %cst_109 = arith.constant 5.000000e-01 : f32
      %287 = vector.broadcast %cst_109 : f32 to vector<8x128xf32>
      %288 = arith.addf %286, %287 : vector<8x128xf32>
      %289 = math.floor %288 : vector<8x128xf32>
      %cst_110 = arith.constant 0.000000e+00 : f32
      %cst_111 = arith.constant 2.550000e+02 : f32
      %290 = vector.broadcast %cst_110 : f32 to vector<8x128xf32>
      %291 = arith.maximumf %290, %289 : vector<8x128xf32>
      %292 = vector.broadcast %cst_111 : f32 to vector<8x128xf32>
      %293 = arith.minimumf %292, %291 : vector<8x128xf32>
      %c2_112 = arith.constant 2 : index
      %c0_113 = arith.constant 0 : index
      %c0_114 = arith.constant 0 : index
      %294 = vector.load %arg4[%c2_112, %c0_113, %c0_114] : memref<3x8x128xf32, #tpu.memory_space<vmem>>, vector<1x8x128xf32>
      %295 = vector.shape_cast %294 : vector<1x8x128xf32> to vector<8x128xf32>
      %296 = vector.shape_cast %293 : vector<8x128xf32> to vector<1x8x128xf32>
      tpu.vector_store %arg4[%c2_112, %c0_113, %c0_114], %296 {strides = array<i32>} : memref<3x8x128xf32, #tpu.memory_space<vmem>>, vector<1x8x128xf32>,
    } else {
    }
    %c15 = arith.constant 15 : index
    %178 = memref.load %arg1[%c15] : memref<20xf32, #tpu.memory_space<smem>>
    %cst_61 = arith.constant 5.000000e-01 : f32
    %179 = arith.cmpf ogt, %178, %cst_61 : f32
    %180 = arith.extui %179 : i1 to i32
    %c0_i32_62 = arith.constant 0 : i32
    %181 = arith.cmpi ne, %180, %c0_i32_62 : i32
    scf.if %181 {
      %c16 = arith.constant 16 : index
      %186 = memref.load %arg1[%c16] : memref<20xf32, #tpu.memory_space<smem>>
      %c17 = arith.constant 17 : index
      %187 = memref.load %arg1[%c17] : memref<20xf32, #tpu.memory_space<smem>>
      %c18 = arith.constant 18 : index
      %188 = memref.load %arg1[%c18] : memref<20xf32, #tpu.memory_space<smem>>
      %c0_70 = arith.constant 0 : index
      %c0_71 = arith.constant 0 : index
      %c0_72 = arith.constant 0 : index
      %189 = vector.load %arg4[%c0_70, %c0_71, %c0_72] : memref<3x8x128xf32, #tpu.memory_space<vmem>>, vector<1x8x128xf32>
      %190 = vector.shape_cast %189 : vector<1x8x128xf32> to vector<8x128xf32>
      %c1_73 = arith.constant 1 : index
      %c0_74 = arith.constant 0 : index
      %c0_75 = arith.constant 0 : index
      %191 = vector.load %arg4[%c1_73, %c0_74, %c0_75] : memref<3x8x128xf32, #tpu.memory_space<vmem>>, vector<1x8x128xf32>
      %192 = vector.shape_cast %191 : vector<1x8x128xf32> to vector<8x128xf32>
      %c2_76 = arith.constant 2 : index
      %c0_77 = arith.constant 0 : index
      %c0_78 = arith.constant 0 : index
      %193 = vector.load %arg4[%c2_76, %c0_77, %c0_78] : memref<3x8x128xf32, #tpu.memory_space<vmem>>, vector<1x8x128xf32>
      %194 = vector.shape_cast %193 : vector<1x8x128xf32> to vector<8x128xf32>
      %cst_79 = arith.constant 0.00392156886 : f32
      %195 = vector.broadcast %cst_79 : f32 to vector<8x128xf32>
      %196 = arith.mulf %190, %195 : vector<8x128xf32>
      %cst_80 = arith.constant 5.500000e-02 : f32
      %197 = vector.broadcast %cst_80 : f32 to vector<8x128xf32>
      %198 = arith.addf %196, %197 : vector<8x128xf32>
      %cst_81 = arith.constant 0.947867274 : f32
      %199 = vector.broadcast %cst_81 : f32 to vector<8x128xf32>
      %200 = arith.mulf %198, %199 : vector<8x128xf32>
      %cst_82 = arith.constant 9.99999993E-9 : f32
      %201 = vector.broadcast %cst_82 : f32 to vector<8x128xf32>
      %202 = arith.maximumf %200, %201 : vector<8x128xf32>
      %203 = math.log %202 : vector<8x128xf32>
      %cst_83 = arith.constant 2.400000e+00 : f32
      %204 = vector.broadcast %cst_83 : f32 to vector<8x128xf32>
      %205 = arith.mulf %204, %203 : vector<8x128xf32>
      %206 = math.exp %205 : vector<8x128xf32>
      %cst_84 = arith.constant 4.045000e-02 : f32
      %207 = vector.broadcast %cst_84 : f32 to vector<8x128xf32>
      %208 = arith.cmpf ole, %196, %207 : vector<8x128xf32>
      %cst_85 = arith.constant 0.0773993805 : f32
      %209 = vector.broadcast %cst_85 : f32 to vector<8x128xf32>
      %210 = arith.mulf %196, %209 : vector<8x128xf32>
      %211 = arith.select %208, %210, %206 : vector<8x128xi1>, vector<8x128xf32>
      %cst_86 = arith.constant 0.00392156886 : f32
      %212 = vector.broadcast %cst_86 : f32 to vector<8x128xf32>
      %213 = arith.mulf %192, %212 : vector<8x128xf32>
      %cst_87 = arith.constant 5.500000e-02 : f32
      %214 = vector.broadcast %cst_87 : f32 to vector<8x128xf32>
      %215 = arith.addf %213, %214 : vector<8x128xf32>
      %cst_88 = arith.constant 0.947867274 : f32
      %216 = vector.broadcast %cst_88 : f32 to vector<8x128xf32>
      %217 = arith.mulf %215, %216 : vector<8x128xf32>
      %cst_89 = arith.constant 9.99999993E-9 : f32
      %218 = vector.broadcast %cst_89 : f32 to vector<8x128xf32>
      %219 = arith.maximumf %217, %218 : vector<8x128xf32>
      %220 = math.log %219 : vector<8x128xf32>
      %cst_90 = arith.constant 2.400000e+00 : f32
      %221 = vector.broadcast %cst_90 : f32 to vector<8x128xf32>
      %222 = arith.mulf %221, %220 : vector<8x128xf32>
      %223 = math.exp %222 : vector<8x128xf32>
      %cst_91 = arith.constant 4.045000e-02 : f32
      %224 = vector.broadcast %cst_91 : f32 to vector<8x128xf32>
      %225 = arith.cmpf ole, %213, %224 : vector<8x128xf32>
      %cst_92 = arith.constant 0.0773993805 : f32
      %226 = vector.broadcast %cst_92 : f32 to vector<8x128xf32>
      %227 = arith.mulf %213, %226 : vector<8x128xf32>
      %228 = arith.select %225, %227, %223 : vector<8x128xi1>, vector<8x128xf32>
      %cst_93 = arith.constant 0.00392156886 : f32
      %229 = vector.broadcast %cst_93 : f32 to vector<8x128xf32>
      %230 = arith.mulf %194, %229 : vector<8x128xf32>
      %cst_94 = arith.constant 5.500000e-02 : f32
      %231 = vector.broadcast %cst_94 : f32 to vector<8x128xf32>
      %232 = arith.addf %230, %231 : vector<8x128xf32>
      %cst_95 = arith.constant 0.947867274 : f32
      %233 = vector.broadcast %cst_95 : f32 to vector<8x128xf32>
      %234 = arith.mulf %232, %233 : vector<8x128xf32>
      %cst_96 = arith.constant 9.99999993E-9 : f32
      %235 = vector.broadcast %cst_96 : f32 to vector<8x128xf32>
      %236 = arith.maximumf %234, %235 : vector<8x128xf32>
      %237 = math.log %236 : vector<8x128xf32>
      %cst_97 = arith.constant 2.400000e+00 : f32
      %238 = vector.broadcast %cst_97 : f32 to vector<8x128xf32>
      %239 = arith.mulf %238, %237 : vector<8x128xf32>
      %240 = math.exp %239 : vector<8x128xf32>
      %cst_98 = arith.constant 4.045000e-02 : f32
      %241 = vector.broadcast %cst_98 : f32 to vector<8x128xf32>
      %242 = arith.cmpf ole, %230, %241 : vector<8x128xf32>
      %cst_99 = arith.constant 0.0773993805 : f32
      %243 = vector.broadcast %cst_99 : f32 to vector<8x128xf32>
      %244 = arith.mulf %230, %243 : vector<8x128xf32>
      %245 = arith.select %242, %244, %240 : vector<8x128xi1>, vector<8x128xf32>
      %cst_100 = arith.constant 4.124530e-01 : f32
      %246 = vector.broadcast %cst_100 : f32 to vector<8x128xf32>
      %247 = arith.mulf %246, %211 : vector<8x128xf32>
      %cst_101 = arith.constant 3.575800e-01 : f32
      %248 = vector.broadcast %cst_101 : f32 to vector<8x128xf32>
      %249 = arith.mulf %248, %228 : vector<8x128xf32>
      %250 = arith.addf %247, %249 : vector<8x128xf32>
      %cst_102 = arith.constant 1.804230e-01 : f32
      %251 = vector.broadcast %cst_102 : f32 to vector<8x128xf32>
      %252 = arith.mulf %251, %245 : vector<8x128xf32>
      %253 = arith.addf %250, %252 : vector<8x128xf32>
      %cst_103 = arith.constant 2.126710e-01 : f32
      %254 = vector.broadcast %cst_103 : f32 to vector<8x128xf32>
      %255 = arith.mulf %254, %211 : vector<8x128xf32>
      %cst_104 = arith.constant 7.151600e-01 : f32
      %256 = vector.broadcast %cst_104 : f32 to vector<8x128xf32>
      %257 = arith.mulf %256, %228 : vector<8x128xf32>
      %258 = arith.addf %255, %257 : vector<8x128xf32>
      %cst_105 = arith.constant 7.216900e-02 : f32
      %259 = vector.broadcast %cst_105 : f32 to vector<8x128xf32>
      %260 = arith.mulf %259, %245 : vector<8x128xf32>
      %261 = arith.addf %258, %260 : vector<8x128xf32>
      %cst_106 = arith.constant 1.933400e-02 : f32
      %262 = vector.broadcast %cst_106 : f32 to vector<8x128xf32>
      %263 = arith.mulf %262, %211 : vector<8x128xf32>
      %cst_107 = arith.constant 1.191930e-01 : f32
      %264 = vector.broadcast %cst_107 : f32 to vector<8x128xf32>
      %265 = arith.mulf %264, %228 : vector<8x128xf32>
      %266 = arith.addf %263, %265 : vector<8x128xf32>
      %cst_108 = arith.constant 9.502270e-01 : f32
      %267 = vector.broadcast %cst_108 : f32 to vector<8x128xf32>
      %268 = arith.mulf %267, %245 : vector<8x128xf32>
      %269 = arith.addf %266, %268 : vector<8x128xf32>
      %cst_109 = arith.constant 1.05212653 : f32
      %270 = vector.broadcast %cst_109 : f32 to vector<8x128xf32>
      %271 = arith.mulf %253, %270 : vector<8x128xf32>
      %cst_110 = arith.constant 0.918481112 : f32
      %272 = vector.broadcast %cst_110 : f32 to vector<8x128xf32>
      %273 = arith.mulf %269, %272 : vector<8x128xf32>
      %cst_111 = arith.constant 9.99999993E-9 : f32
      %274 = vector.broadcast %cst_111 : f32 to vector<8x128xf32>
      %275 = arith.maximumf %271, %274 : vector<8x128xf32>
      %276 = math.log %275 : vector<8x128xf32>
      %cst_112 = arith.constant 0.333333343 : f32
      %277 = vector.broadcast %cst_112 : f32 to vector<8x128xf32>
      %278 = arith.mulf %276, %277 : vector<8x128xf32>
      %279 = math.exp %278 : vector<8x128xf32>
      %cst_113 = arith.constant 8.856000e-03 : f32
      %280 = vector.broadcast %cst_113 : f32 to vector<8x128xf32>
      %281 = arith.cmpf ogt, %271, %280 : vector<8x128xf32>
      %cst_114 = arith.constant 7.787000e+00 : f32
      %282 = vector.broadcast %cst_114 : f32 to vector<8x128xf32>
      %283 = arith.mulf %282, %271 : vector<8x128xf32>
      %cst_115 = arith.constant 0.137931034 : f32
      %284 = vector.broadcast %cst_115 : f32 to vector<8x128xf32>
      %285 = arith.addf %283, %284 : vector<8x128xf32>
      %286 = arith.select %281, %279, %285 : vector<8x128xi1>, vector<8x128xf32>
      %cst_116 = arith.constant 9.99999993E-9 : f32
      %287 = vector.broadcast %cst_116 : f32 to vector<8x128xf32>
      %288 = arith.maximumf %261, %287 : vector<8x128xf32>
      %289 = math.log %288 : vector<8x128xf32>
      %cst_117 = arith.constant 0.333333343 : f32
      %290 = vector.broadcast %cst_117 : f32 to vector<8x128xf32>
      %291 = arith.mulf %289, %290 : vector<8x128xf32>
      %292 = math.exp %291 : vector<8x128xf32>
      %cst_118 = arith.constant 8.856000e-03 : f32
      %293 = vector.broadcast %cst_118 : f32 to vector<8x128xf32>
      %294 = arith.cmpf ogt, %261, %293 : vector<8x128xf32>
      %cst_119 = arith.constant 7.787000e+00 : f32
      %295 = vector.broadcast %cst_119 : f32 to vector<8x128xf32>
      %296 = arith.mulf %295, %261 : vector<8x128xf32>
      %cst_120 = arith.constant 0.137931034 : f32
      %297 = vector.broadcast %cst_120 : f32 to vector<8x128xf32>
      %298 = arith.addf %296, %297 : vector<8x128xf32>
      %299 = arith.select %294, %292, %298 : vector<8x128xi1>, vector<8x128xf32>
      %cst_121 = arith.constant 9.99999993E-9 : f32
      %300 = vector.broadcast %cst_121 : f32 to vector<8x128xf32>
      %301 = arith.maximumf %273, %300 : vector<8x128xf32>
      %302 = math.log %301 : vector<8x128xf32>
      %cst_122 = arith.constant 0.333333343 : f32
      %303 = vector.broadcast %cst_122 : f32 to vector<8x128xf32>
      %304 = arith.mulf %302, %303 : vector<8x128xf32>
      %305 = math.exp %304 : vector<8x128xf32>
      %cst_123 = arith.constant 8.856000e-03 : f32
      %306 = vector.broadcast %cst_123 : f32 to vector<8x128xf32>
      %307 = arith.cmpf ogt, %273, %306 : vector<8x128xf32>
      %cst_124 = arith.constant 7.787000e+00 : f32
      %308 = vector.broadcast %cst_124 : f32 to vector<8x128xf32>
      %309 = arith.mulf %308, %273 : vector<8x128xf32>
      %cst_125 = arith.constant 0.137931034 : f32
      %310 = vector.broadcast %cst_125 : f32 to vector<8x128xf32>
      %311 = arith.addf %309, %310 : vector<8x128xf32>
      %312 = arith.select %307, %305, %311 : vector<8x128xi1>, vector<8x128xf32>
      %cst_126 = arith.constant 1.160000e+02 : f32
      %313 = vector.broadcast %cst_126 : f32 to vector<8x128xf32>
      %314 = arith.mulf %313, %299 : vector<8x128xf32>
      %cst_127 = arith.constant 1.600000e+01 : f32
      %315 = vector.broadcast %cst_127 : f32 to vector<8x128xf32>
      %316 = arith.subf %314, %315 : vector<8x128xf32>
      %317 = arith.subf %286, %299 : vector<8x128xf32>
      %cst_128 = arith.constant 5.000000e+02 : f32
      %318 = vector.broadcast %cst_128 : f32 to vector<8x128xf32>
      %319 = arith.mulf %318, %317 : vector<8x128xf32>
      %320 = arith.subf %299, %312 : vector<8x128xf32>
      %cst_129 = arith.constant 2.000000e+02 : f32
      %321 = vector.broadcast %cst_129 : f32 to vector<8x128xf32>
      %322 = arith.mulf %321, %320 : vector<8x128xf32>
      %323 = vector.broadcast %186 : f32 to vector<8x128xf32>
      %324 = arith.addf %316, %323 : vector<8x128xf32>
      %cst_130 = arith.constant 0.000000e+00 : f32
      %cst_131 = arith.constant 1.000000e+02 : f32
      %325 = vector.broadcast %cst_130 : f32 to vector<8x128xf32>
      %326 = arith.maximumf %325, %324 : vector<8x128xf32>
      %327 = vector.broadcast %cst_131 : f32 to vector<8x128xf32>
      %328 = arith.minimumf %327, %326 : vector<8x128xf32>
      %329 = vector.broadcast %187 : f32 to vector<8x128xf32>
      %330 = arith.addf %319, %329 : vector<8x128xf32>
      %331 = vector.broadcast %188 : f32 to vector<8x128xf32>
      %332 = arith.addf %322, %331 : vector<8x128xf32>
      %cst_132 = arith.constant 1.600000e+01 : f32
      %333 = vector.broadcast %cst_132 : f32 to vector<8x128xf32>
      %334 = arith.addf %328, %333 : vector<8x128xf32>
      %cst_133 = arith.constant 8.620690e-03 : f32
      %335 = vector.broadcast %cst_133 : f32 to vector<8x128xf32>
      %336 = arith.mulf %334, %335 : vector<8x128xf32>
      %cst_134 = arith.constant 2.000000e-03 : f32
      %337 = vector.broadcast %cst_134 : f32 to vector<8x128xf32>
      %338 = arith.mulf %330, %337 : vector<8x128xf32>
      %339 = arith.addf %336, %338 : vector<8x128xf32>
      %cst_135 = arith.constant 5.000000e-03 : f32
      %340 = vector.broadcast %cst_135 : f32 to vector<8x128xf32>
      %341 = arith.mulf %332, %340 : vector<8x128xf32>
      %342 = arith.subf %336, %341 : vector<8x128xf32>
      %343 = arith.mulf %339, %339 : vector<8x128xf32>
      %344 = arith.mulf %343, %339 : vector<8x128xf32>
      %cst_136 = arith.constant 8.856000e-03 : f32
      %345 = vector.broadcast %cst_136 : f32 to vector<8x128xf32>
      %346 = arith.cmpf ogt, %344, %345 : vector<8x128xf32>
      %cst_137 = arith.constant 0.137931034 : f32
      %347 = vector.broadcast %cst_137 : f32 to vector<8x128xf32>
      %348 = arith.subf %339, %347 : vector<8x128xf32>
      %cst_138 = arith.constant 0.128419161 : f32
      %349 = vector.broadcast %cst_138 : f32 to vector<8x128xf32>
      %350 = arith.mulf %348, %349 : vector<8x128xf32>
      %351 = arith.select %346, %344, %350 : vector<8x128xi1>, vector<8x128xf32>
      %cst_139 = arith.constant 9.504560e-01 : f32
      %352 = vector.broadcast %cst_139 : f32 to vector<8x128xf32>
      %353 = arith.mulf %351, %352 : vector<8x128xf32>
      %354 = arith.mulf %336, %336 : vector<8x128xf32>
      %355 = arith.mulf %354, %336 : vector<8x128xf32>
      %cst_140 = arith.constant 8.856000e-03 : f32
      %356 = vector.broadcast %cst_140 : f32 to vector<8x128xf32>
      %357 = arith.cmpf ogt, %355, %356 : vector<8x128xf32>
      %cst_141 = arith.constant 0.137931034 : f32
      %358 = vector.broadcast %cst_141 : f32 to vector<8x128xf32>
      %359 = arith.subf %336, %358 : vector<8x128xf32>
      %cst_142 = arith.constant 0.128419161 : f32
      %360 = vector.broadcast %cst_142 : f32 to vector<8x128xf32>
      %361 = arith.mulf %359, %360 : vector<8x128xf32>
      %362 = arith.select %357, %355, %361 : vector<8x128xi1>, vector<8x128xf32>
      %363 = arith.mulf %342, %342 : vector<8x128xf32>
      %364 = arith.mulf %363, %342 : vector<8x128xf32>
      %cst_143 = arith.constant 8.856000e-03 : f32
      %365 = vector.broadcast %cst_143 : f32 to vector<8x128xf32>
      %366 = arith.cmpf ogt, %364, %365 : vector<8x128xf32>
      %cst_144 = arith.constant 0.137931034 : f32
      %367 = vector.broadcast %cst_144 : f32 to vector<8x128xf32>
      %368 = arith.subf %342, %367 : vector<8x128xf32>
      %cst_145 = arith.constant 0.128419161 : f32
      %369 = vector.broadcast %cst_145 : f32 to vector<8x128xf32>
      %370 = arith.mulf %368, %369 : vector<8x128xf32>
      %371 = arith.select %366, %364, %370 : vector<8x128xi1>, vector<8x128xf32>
      %cst_146 = arith.constant 1.08875406 : f32
      %372 = vector.broadcast %cst_146 : f32 to vector<8x128xf32>
      %373 = arith.mulf %371, %372 : vector<8x128xf32>
      %cst_147 = arith.constant 3.24047899 : f32
      %374 = vector.broadcast %cst_147 : f32 to vector<8x128xf32>
      %375 = arith.mulf %374, %353 : vector<8x128xf32>
      %cst_148 = arith.constant 1.537150e+00 : f32
      %376 = vector.broadcast %cst_148 : f32 to vector<8x128xf32>
      %377 = arith.mulf %376, %362 : vector<8x128xf32>
      %378 = arith.subf %375, %377 : vector<8x128xf32>
      %cst_149 = arith.constant 4.985350e-01 : f32
      %379 = vector.broadcast %cst_149 : f32 to vector<8x128xf32>
      %380 = arith.mulf %379, %373 : vector<8x128xf32>
      %381 = arith.subf %378, %380 : vector<8x128xf32>
      %cst_150 = arith.constant -0.969255983 : f32
      %382 = vector.broadcast %cst_150 : f32 to vector<8x128xf32>
      %383 = arith.mulf %382, %353 : vector<8x128xf32>
      %cst_151 = arith.constant 1.87599194 : f32
      %384 = vector.broadcast %cst_151 : f32 to vector<8x128xf32>
      %385 = arith.mulf %384, %362 : vector<8x128xf32>
      %386 = arith.addf %383, %385 : vector<8x128xf32>
      %cst_152 = arith.constant 4.155600e-02 : f32
      %387 = vector.broadcast %cst_152 : f32 to vector<8x128xf32>
      %388 = arith.mulf %387, %373 : vector<8x128xf32>
      %389 = arith.addf %386, %388 : vector<8x128xf32>
      %cst_153 = arith.constant 5.564800e-02 : f32
      %390 = vector.broadcast %cst_153 : f32 to vector<8x128xf32>
      %391 = arith.mulf %390, %353 : vector<8x128xf32>
      %cst_154 = arith.constant 2.040430e-01 : f32
      %392 = vector.broadcast %cst_154 : f32 to vector<8x128xf32>
      %393 = arith.mulf %392, %362 : vector<8x128xf32>
      %394 = arith.subf %391, %393 : vector<8x128xf32>
      %cst_155 = arith.constant 1.05731106 : f32
      %395 = vector.broadcast %cst_155 : f32 to vector<8x128xf32>
      %396 = arith.mulf %395, %373 : vector<8x128xf32>
      %397 = arith.addf %394, %396 : vector<8x128xf32>
      %cst_156 = arith.constant 0.000000e+00 : f32
      %cst_157 = arith.constant 1.000000e+00 : f32
      %398 = vector.broadcast %cst_156 : f32 to vector<8x128xf32>
      %399 = arith.maximumf %398, %381 : vector<8x128xf32>
      %400 = vector.broadcast %cst_157 : f32 to vector<8x128xf32>
      %401 = arith.minimumf %400, %399 : vector<8x128xf32>
      %cst_158 = arith.constant 9.99999993E-9 : f32
      %402 = vector.broadcast %cst_158 : f32 to vector<8x128xf32>
      %403 = arith.maximumf %401, %402 : vector<8x128xf32>
      %404 = math.log %403 : vector<8x128xf32>
      %cst_159 = arith.constant 0.416666657 : f32
      %405 = vector.broadcast %cst_159 : f32 to vector<8x128xf32>
      %406 = arith.mulf %404, %405 : vector<8x128xf32>
      %407 = math.exp %406 : vector<8x128xf32>
      %cst_160 = arith.constant 1.055000e+00 : f32
      %408 = vector.broadcast %cst_160 : f32 to vector<8x128xf32>
      %409 = arith.mulf %408, %407 : vector<8x128xf32>
      %cst_161 = arith.constant 5.500000e-02 : f32
      %410 = vector.broadcast %cst_161 : f32 to vector<8x128xf32>
      %411 = arith.subf %409, %410 : vector<8x128xf32>
      %cst_162 = arith.constant 3.130800e-03 : f32
      %412 = vector.broadcast %cst_162 : f32 to vector<8x128xf32>
      %413 = arith.cmpf ole, %401, %412 : vector<8x128xf32>
      %cst_163 = arith.constant 1.292000e+01 : f32
      %414 = vector.broadcast %cst_163 : f32 to vector<8x128xf32>
      %415 = arith.mulf %414, %401 : vector<8x128xf32>
      %416 = arith.select %413, %415, %411 : vector<8x128xi1>, vector<8x128xf32>
      %cst_164 = arith.constant 2.550000e+02 : f32
      %417 = vector.broadcast %cst_164 : f32 to vector<8x128xf32>
      %418 = arith.mulf %416, %417 : vector<8x128xf32>
      %cst_165 = arith.constant 5.000000e-01 : f32
      %419 = vector.broadcast %cst_165 : f32 to vector<8x128xf32>
      %420 = arith.addf %418, %419 : vector<8x128xf32>
      %421 = math.floor %420 : vector<8x128xf32>
      %cst_166 = arith.constant 0.000000e+00 : f32
      %cst_167 = arith.constant 2.550000e+02 : f32
      %422 = vector.broadcast %cst_166 : f32 to vector<8x128xf32>
      %423 = arith.maximumf %422, %421 : vector<8x128xf32>
      %424 = vector.broadcast %cst_167 : f32 to vector<8x128xf32>
      %425 = arith.minimumf %424, %423 : vector<8x128xf32>
      %c0_168 = arith.constant 0 : index
      %c0_169 = arith.constant 0 : index
      %c0_170 = arith.constant 0 : index
      %426 = vector.load %arg4[%c0_168, %c0_169, %c0_170] : memref<3x8x128xf32, #tpu.memory_space<vmem>>, vector<1x8x128xf32>
      %427 = vector.shape_cast %426 : vector<1x8x128xf32> to vector<8x128xf32>
      %428 = vector.shape_cast %425 : vector<8x128xf32> to vector<1x8x128xf32>
      tpu.vector_store %arg4[%c0_168, %c0_169, %c0_170], %428 {strides = array<i32>} : memref<3x8x128xf32, #tpu.memory_space<vmem>>, vector<1x8x128xf32>,
      %cst_171 = arith.constant 0.000000e+00 : f32
      %cst_172 = arith.constant 1.000000e+00 : f32
      %429 = vector.broadcast %cst_171 : f32 to vector<8x128xf32>
      %430 = arith.maximumf %429, %389 : vector<8x128xf32>
      %431 = vector.broadcast %cst_172 : f32 to vector<8x128xf32>
      %432 = arith.minimumf %431, %430 : vector<8x128xf32>
      %cst_173 = arith.constant 9.99999993E-9 : f32
      %433 = vector.broadcast %cst_173 : f32 to vector<8x128xf32>
      %434 = arith.maximumf %432, %433 : vector<8x128xf32>
      %435 = math.log %434 : vector<8x128xf32>
      %cst_174 = arith.constant 0.416666657 : f32
      %436 = vector.broadcast %cst_174 : f32 to vector<8x128xf32>
      %437 = arith.mulf %435, %436 : vector<8x128xf32>
      %438 = math.exp %437 : vector<8x128xf32>
      %cst_175 = arith.constant 1.055000e+00 : f32
      %439 = vector.broadcast %cst_175 : f32 to vector<8x128xf32>
      %440 = arith.mulf %439, %438 : vector<8x128xf32>
      %cst_176 = arith.constant 5.500000e-02 : f32
      %441 = vector.broadcast %cst_176 : f32 to vector<8x128xf32>
      %442 = arith.subf %440, %441 : vector<8x128xf32>
      %cst_177 = arith.constant 3.130800e-03 : f32
      %443 = vector.broadcast %cst_177 : f32 to vector<8x128xf32>
      %444 = arith.cmpf ole, %432, %443 : vector<8x128xf32>
      %cst_178 = arith.constant 1.292000e+01 : f32
      %445 = vector.broadcast %cst_178 : f32 to vector<8x128xf32>
      %446 = arith.mulf %445, %432 : vector<8x128xf32>
      %447 = arith.select %444, %446, %442 : vector<8x128xi1>, vector<8x128xf32>
      %cst_179 = arith.constant 2.550000e+02 : f32
      %448 = vector.broadcast %cst_179 : f32 to vector<8x128xf32>
      %449 = arith.mulf %447, %448 : vector<8x128xf32>
      %cst_180 = arith.constant 5.000000e-01 : f32
      %450 = vector.broadcast %cst_180 : f32 to vector<8x128xf32>
      %451 = arith.addf %449, %450 : vector<8x128xf32>
      %452 = math.floor %451 : vector<8x128xf32>
      %cst_181 = arith.constant 0.000000e+00 : f32
      %cst_182 = arith.constant 2.550000e+02 : f32
      %453 = vector.broadcast %cst_181 : f32 to vector<8x128xf32>
      %454 = arith.maximumf %453, %452 : vector<8x128xf32>
      %455 = vector.broadcast %cst_182 : f32 to vector<8x128xf32>
      %456 = arith.minimumf %455, %454 : vector<8x128xf32>
      %c1_183 = arith.constant 1 : index
      %c0_184 = arith.constant 0 : index
      %c0_185 = arith.constant 0 : index
      %457 = vector.load %arg4[%c1_183, %c0_184, %c0_185] : memref<3x8x128xf32, #tpu.memory_space<vmem>>, vector<1x8x128xf32>
      %458 = vector.shape_cast %457 : vector<1x8x128xf32> to vector<8x128xf32>
      %459 = vector.shape_cast %456 : vector<8x128xf32> to vector<1x8x128xf32>
      tpu.vector_store %arg4[%c1_183, %c0_184, %c0_185], %459 {strides = array<i32>} : memref<3x8x128xf32, #tpu.memory_space<vmem>>, vector<1x8x128xf32>,
      %cst_186 = arith.constant 0.000000e+00 : f32
      %cst_187 = arith.constant 1.000000e+00 : f32
      %460 = vector.broadcast %cst_186 : f32 to vector<8x128xf32>
      %461 = arith.maximumf %460, %397 : vector<8x128xf32>
      %462 = vector.broadcast %cst_187 : f32 to vector<8x128xf32>
      %463 = arith.minimumf %462, %461 : vector<8x128xf32>
      %cst_188 = arith.constant 9.99999993E-9 : f32
      %464 = vector.broadcast %cst_188 : f32 to vector<8x128xf32>
      %465 = arith.maximumf %463, %464 : vector<8x128xf32>
      %466 = math.log %465 : vector<8x128xf32>
      %cst_189 = arith.constant 0.416666657 : f32
      %467 = vector.broadcast %cst_189 : f32 to vector<8x128xf32>
      %468 = arith.mulf %466, %467 : vector<8x128xf32>
      %469 = math.exp %468 : vector<8x128xf32>
      %cst_190 = arith.constant 1.055000e+00 : f32
      %470 = vector.broadcast %cst_190 : f32 to vector<8x128xf32>
      %471 = arith.mulf %470, %469 : vector<8x128xf32>
      %cst_191 = arith.constant 5.500000e-02 : f32
      %472 = vector.broadcast %cst_191 : f32 to vector<8x128xf32>
      %473 = arith.subf %471, %472 : vector<8x128xf32>
      %cst_192 = arith.constant 3.130800e-03 : f32
      %474 = vector.broadcast %cst_192 : f32 to vector<8x128xf32>
      %475 = arith.cmpf ole, %463, %474 : vector<8x128xf32>
      %cst_193 = arith.constant 1.292000e+01 : f32
      %476 = vector.broadcast %cst_193 : f32 to vector<8x128xf32>
      %477 = arith.mulf %476, %463 : vector<8x128xf32>
      %478 = arith.select %475, %477, %473 : vector<8x128xi1>, vector<8x128xf32>
      %cst_194 = arith.constant 2.550000e+02 : f32
      %479 = vector.broadcast %cst_194 : f32 to vector<8x128xf32>
      %480 = arith.mulf %478, %479 : vector<8x128xf32>
      %cst_195 = arith.constant 5.000000e-01 : f32
      %481 = vector.broadcast %cst_195 : f32 to vector<8x128xf32>
      %482 = arith.addf %480, %481 : vector<8x128xf32>
      %483 = math.floor %482 : vector<8x128xf32>
      %cst_196 = arith.constant 0.000000e+00 : f32
      %cst_197 = arith.constant 2.550000e+02 : f32
      %484 = vector.broadcast %cst_196 : f32 to vector<8x128xf32>
      %485 = arith.maximumf %484, %483 : vector<8x128xf32>
      %486 = vector.broadcast %cst_197 : f32 to vector<8x128xf32>
      %487 = arith.minimumf %486, %485 : vector<8x128xf32>
      %c2_198 = arith.constant 2 : index
      %c0_199 = arith.constant 0 : index
      %c0_200 = arith.constant 0 : index
      %488 = vector.load %arg4[%c2_198, %c0_199, %c0_200] : memref<3x8x128xf32, #tpu.memory_space<vmem>>, vector<1x8x128xf32>
      %489 = vector.shape_cast %488 : vector<1x8x128xf32> to vector<8x128xf32>
      %490 = vector.shape_cast %487 : vector<8x128xf32> to vector<1x8x128xf32>
      tpu.vector_store %arg4[%c2_198, %c0_199, %c0_200], %490 {strides = array<i32>} : memref<3x8x128xf32, #tpu.memory_space<vmem>>, vector<1x8x128xf32>,
    } else {
    }
    %c0_63 = arith.constant 0 : index
    %c0_64 = arith.constant 0 : index
    %c0_65 = arith.constant 0 : index
    %182 = vector.load %arg4[%c0_63, %c0_64, %c0_65] : memref<3x8x128xf32, #tpu.memory_space<vmem>>, vector<3x8x128xf32>
    %cst_66 = arith.constant 0.00392156886 : f32
    %183 = vector.broadcast %cst_66 : f32 to vector<3x8x128xf32>
    %184 = arith.mulf %182, %183 : vector<3x8x128xf32>
    %c0_67 = arith.constant 0 : index
    %c0_68 = arith.constant 0 : index
    %c0_69 = arith.constant 0 : index
    %185 = vector.load %arg3[%c0_67, %c0_68, %c0_69] : memref<3x8x128xf32, #tpu.memory_space<vmem>>, vector<3x8x128xf32>
    tpu.vector_store %arg3[%c0_67, %c0_68, %c0_69], %184 {strides = array<i32>} : memref<3x8x128xf32, #tpu.memory_space<vmem>>, vector<3x8x128xf32>,
    return
  }
  func.func @transform_0(%arg0: i32) -> i32 {
    %c0_i32 = arith.constant 0 : i32
    %c0_i32_0 = arith.constant 0 : i32
    return %c0_i32 : i32
  }
  func.func @transform_1(%arg0: i32) -> (i32, i32, i32) {
    %c0_i32 = arith.constant 0 : i32
    %c0_i32_0 = arith.constant 0 : i32
    %c0_i32_1 = arith.constant 0 : i32
    return %c0_i32, %arg0, %c0_i32_0 : i32, i32, i32
  }
  func.func @transform_2(%arg0: i32) -> (i32, i32, i32) {
    %c0_i32 = arith.constant 0 : i32
    %c0_i32_0 = arith.constant 0 : i32
    %c0_i32_1 = arith.constant 0 : i32
    return %c0_i32, %arg0, %c0_i32_0 : i32, i32, i32
  }
}

</mosaic_0001>

<llo_original>
// kernel: tpu_custom_call.1
$region0: #{tpu_custom_call.1}
  #allocation0 [shape = 'u32[]', space=smem, size = 0x4, offset = 0x4, fixed_abs, tag = 'smem constant byte address 0x4 - core index']
  #allocation1 [shape = 'u32[144,128]{1,0:T(1,128)}', space=vmem, size = 0x12000, scoped, tag = 'internal scratch']
  #allocation2 [shape = 'f32[3,8,128]{2,1,0:T(8,128)}', space=vmem, size = 0x3000, scoped, tag = 'scratch operand']
  %s0 = inlined_call_operand.hbm [shape: f32[20], index: 0, kind: input, shape index: {}]
  %s1 = inlined_call_operand.hbm [shape: f32[3,8,128], index: 1, kind: input, shape index: {}]
  %s2 = inlined_call_operand.hbm [shape: f32[3,8,128], index: 2, kind: output, shape index: {}]
  %s3 = sld [smem:[#allocation0]]
  $region34: #{tpu_custom_call.1} parent=0
    _
  %s5 = ssub.s32 1, %s3
  %s6 = scalar_select 0, %s5, %s3
  $region1: #{tpu_custom_call.1} parent=0
    #allocation3 [shape = 'u8[512]{0}', space=smem, size = 0x200, scoped, tag = 'input window, operand 0, single buffered']
    #allocation4 [shape = 's32[1]{0}', space=sflag, size = 0x4, scoped, tag = 'scoped memory for tpu_custom_call.1']
    #allocation5 [shape = 's32[1]{0}', space=sflag, size = 0x4, scoped, tag = 'scoped memory for tpu_custom_call.1']
    #allocation6 [shape = 's32[1]{0}', space=sflag, size = 0x4, scoped, tag = 'scoped memory for tpu_custom_call.1']
    #allocation7 [shape = 'u8[12288]{0}', space=vmem, size = 0x3000, scoped, tag = 'input window, operand 1, single buffered']
    #allocation8 [shape = 'u8[12288]{0}', space=vmem, size = 0x3000, scoped, tag = 'output window, operand 0, single buffered']
    %7 = vsyncpa [#allocation6], 0
    %8 = vsyncpa [#allocation4], 0
    %9 = vsyncpa [#allocation5], 0
    // Predicated region
    $region2: #{tpu_custom_call.1} parent=1 // pred_check
      _
    $region3: #{tpu_custom_call.1} parent=1 // pred_check_branch
      %11 = sbr.rel (0) target = $region5
    $region4: #{tpu_custom_call.1} parent=1 // pred_region
      %s13 = ssub.s32 16, 16
      %14 = vsyncadd [#allocation6], %s13
      %17 = dma.hbm_to_smem %s0, 16, [#allocation3], [#allocation6]
    $region5: #{tpu_custom_call.1} parent=1 // pred_fallthru
      _
    // Predicated region
    $region6: #{tpu_custom_call.1} parent=1 // pred_check
      _
    $region7: #{tpu_custom_call.1} parent=1 // pred_check_branch
      %19 = sbr.rel (0) target = $region9
    $region8: #{tpu_custom_call.1} parent=1 // pred_region
      %s21 = ssub.s32 384, 384
      %22 = vsyncadd [#allocation4], %s21
      %s23 = sshll.u32 [#allocation7], 4
      %s24 = int_to_ptr.vmem [resolvable:$true] %s23
      %29 = dma.hbm_to_vmem [thread:$0]  %s1, 384, %s24, [#allocation4], 128, 128, 8
    $region9: #{tpu_custom_call.1} parent=1 // pred_fallthru
      _
    // Predicated region
    $region10: #{tpu_custom_call.1} parent=1 // pred_check
      _
    $region11: #{tpu_custom_call.1} parent=1 // pred_check_branch
      %31 = sbr.rel (0) target = $region13
    $region12: #{tpu_custom_call.1} parent=1 // pred_region
      %32 = dma.done [#allocation6], 16
    $region13: #{tpu_custom_call.1} parent=1 // pred_fallthru
      _
    // Predicated region
    $region14: #{tpu_custom_call.1} parent=1 // pred_check
      _
    $region15: #{tpu_custom_call.1} parent=1 // pred_check_branch
      %34 = sbr.rel (0) target = $region17
    $region16: #{tpu_custom_call.1} parent=1 // pred_region
      %35 = dma.done [#allocation4], 384
    $region17: #{tpu_custom_call.1} parent=1 // pred_fallthru
      _
    %36 = sfence
    %v37 = vld [vmem:[#allocation7] sm:$0xff]
    %v38 = vld [vmem:[#allocation7 + $0x8] sm:$0xff]
    %v39 = vld [vmem:[#allocation7 + $0x10] sm:$0xff]
    %v40 = vmax.f32 %v37, 0.0
    %v41 = vmax.f32 %v38, 0.0
    %v42 = vmax.f32 %v39, 0.0
    %v43 = vmin.f32 %v40, 1.0
    %v44 = vmin.f32 %v41, 1.0
    %v45 = vmin.f32 %v42, 1.0
    %v46 = vmul.f32 %v43, 255.0
    %v47 = vmul.f32 %v44, 255.0
    %v48 = vmul.f32 %v45, 255.0
    %v49 = vfloor.f32 %v46
    %v50 = vfloor.f32 %v47
    %v51 = vfloor.f32 %v48
    %s52 = sld [smem:[#allocation3]]
    %s53 = sld [smem:[#allocation3 + $0x1]]
    %s54 = sld [smem:[#allocation3 + $0x13]]
    %v55 = vstv %s52
    %v56 = vmul.f32 %v49, %v55
    %v57 = vmul.f32 %v50, %v55
    %v58 = vmul.f32 %v51, %v55
    %s59 = smul.f32 %s53, %s54
    %v60 = vstv %s59
    %v61 = vadd.f32 %v56, %v60
    %v62 = vadd.f32 %v57, %v60
    %v63 = vadd.f32 %v58, %v60
    %v64 = vadd.f32 %v61, 0.5
    %v65 = vadd.f32 %v62, 0.5
    %v66 = vadd.f32 %v63, 0.5
    %v67 = vfloor.f32 %v64
    %v68 = vfloor.f32 %v65
    %v69 = vfloor.f32 %v66
    %v70 = vmax.f32 %v67, 0.0
    %v71 = vmax.f32 %v68, 0.0
    %v72 = vmax.f32 %v69, 0.0
    %v73 = vmin.f32 %v70, 255.0
    %v74 = vmin.f32 %v71, 255.0
    %v75 = vmin.f32 %v72, 255.0
    %s76 = sld [smem:[#allocation3 + $0x2]]
    %s77 = smul.f32 %s76, 2.0
    %s78 = sld [smem:[#allocation3 + $0x3]]
    %s79 = sld [smem:[#allocation3 + $0x4]]
    %v80 = vmax.f32 %v73, %v74
    %v81 = vmax.f32 %v80, %v75
    %v82 = vmin.f32 %v73, %v74
    %v83 = vmin.f32 %v82, %v75
    %v84 = vsub.f32 %v81, %v83
    %vm85 = vcmp.eq.f32.partialorder %v84, 0.0
    %v86 = vsel %vm85, 1.0, %v84
    %v87 = vrcp.pop %v86
    %vm88 = vcmp.eq.f32.partialorder %v81, %v73
    %v89 = vsub.f32 %v74, %v75
    %v90 = vmul.f32 %v89, %v87
    %vm91 = vcmp.eq.f32.partialorder %v81, %v74
    %v92 = vsub.f32 %v75, %v73
    %v93 = vmul.f32 %v92, %v87
    %v94 = vadd.f32 %v93, 2.0
    %v95 = vsub.f32 %v73, %v74
    %v96 = vmul.f32 %v95, %v87
    %v97 = vadd.f32 %v96, 4.0
    %v98 = vsel %vm91, %v94, %v97
    %v99 = vsel %vm88, %v90, %v98
    %v100 = vmul.f32 %v99, 60.0
    %vm101 = vcmp.lt.f32.partialorder %v100, 0.0
    %v102 = vadd.f32 %v100, 360.0
    %v103 = vsel %vm101, %v102, %v100
    %v104 = vsel %vm85, 0.0, %v103
    %v105 = vmax.f32 %v81, 1e-06
    %v106 = vrcp.pop %v105
    %vm107 = vcmp.gt.f32.partialorder %v81, 0.0
    %v108 = vmul.f32 %v84, %v106
    %v109 = vmul.f32 %v108, 255.0
    %v110 = vsel %vm107, %v109, 0.0
    %v111 = vstv %s77
    %v112 = vadd.f32 %v104, %v111
    %vm113 = vcmp.lt.f32.partialorder %v112, 0.0
    %v114 = vadd.f32 %v112, 360.0
    %v115 = vsel %vm113, %v114, %v112
    %vm116 = vcmp.ge.f32.partialorder %v115, 360.0
    %v117 = vsub.f32 %v115, 360.0
    %v118 = vsel %vm116, %v117, %v115
    %v119 = vstv %s78
    %v120 = vadd.f32 %v110, %v119
    %v121 = vmax.f32 %v120, 0.0
    %v122 = vmin.f32 %v121, 255.0
    %v123 = vstv %s79
    %v124 = vadd.f32 %v81, %v123
    %v125 = vmax.f32 %v124, 0.0
    %v126 = vmin.f32 %v125, 255.0
    %v127 = vmul.f32 %v122, 0.003921569
    %v128 = vmul.f32 %v126, %v127
    %v129 = vmul.f32 %v118, 0.016666668
    %v130 = vmul.f32 %v129, 0.5
    %v131 = vfloor.f32 %v130
    %v132 = vmul.f32 %v131, 2.0
    %v133 = vsub.f32 %v129, %v132
    %v134 = vsub.f32 %v133, 1.0
    %v135 = vand.u32 2147483647, %v134
    %v136 = vsub.f32 1.0, %v135
    %v137 = vmul.f32 %v128, %v136
    %v138 = vsub.f32 %v126, %v128
    %vm139 = vcmp.lt.f32.partialorder %v129, 1.0
    %vm140 = vcmp.lt.f32.partialorder %v129, 2.0
    %vm141 = vcmp.lt.f32.partialorder %v129, 3.0
    %vm142 = vcmp.lt.f32.partialorder %v129, 4.0
    %vm143 = vcmp.lt.f32.partialorder %v129, 5.0
    %v144 = vsel %vm143, %v137, %v128
    %v145 = vsel %vm142, 0.0, %v144
    %v146 = vsel %vm140, %v137, %v145
    %v147 = vsel %vm139, %v128, %v146
    %v148 = vsel %vm142, %v137, 0.0
    %v149 = vsel %vm141, %v128, %v148
    %v150 = vsel %vm139, %v137, %v149
    %v151 = vsel %vm143, %v128, %v137
    %v152 = vsel %vm141, %v137, %v151
    %v153 = vsel %vm140, 0.0, %v152
    %v154 = vadd.f32 %v147, %v138
    %v155 = vadd.f32 %v154, 0.5
    %v156 = vfloor.f32 %v155
    %v157 = vmax.f32 %v156, 0.0
    %v158 = vmin.f32 %v157, 255.0
    %159 = vst [vmem:[#allocation2] sm:$0xff] %v158
    %v160 = vadd.f32 %v150, %v138
    %v161 = vadd.f32 %v160, 0.5
    %v162 = vfloor.f32 %v161
    %v163 = vmax.f32 %v162, 0.0
    %v164 = vmin.f32 %v163, 255.0
    %s165 = scalar_lea.vmem [#allocation2], 8
    %166 = vst [vmem:[%s165] sm:$0xff] %v164
    %v167 = vadd.f32 %v153, %v138
    %v168 = vadd.f32 %v167, 0.5
    %v169 = vfloor.f32 %v168
    %v170 = vmax.f32 %v169, 0.0
    %v171 = vmin.f32 %v170, 255.0
    %s172 = scalar_lea.vmem [#allocation2], 16
    %173 = vst [vmem:[%s172] sm:$0xff] %v171
    %s174 = sld [smem:[#allocation3 + $0x5]]
    %p175 = scmp.gt.f32.partialorder %s174, 0.5
    // Predicated region
    $region18: #{tpu_custom_call.1} parent=1 // pred_check
      %p176 = pneg %p175
    $region19: #{tpu_custom_call.1} parent=1 // pred_check_branch
      %178 = sbr.rel (%p176) target = $region21
    $region20: #{tpu_custom_call.1} parent=1 // pred_region
      %v179 = vld [vmem:[#allocation2] sm:$0xff]
      %v180 = vld [vmem:[%s165] sm:$0xff]
      %v181 = vld [vmem:[%s172] sm:$0xff]
      %v182 = vadd.f32 %v179, 1.0
      %v183 = vmul.f32 %v182, 0.00390625
      %v184 = vlog2.pop %v183
      %v185 = vmul.f32 %v184, 0.6931472
      %v186 = vsub.f32 0.0, %v185
      %v187 = vadd.f32 %v180, 1.0
      %v188 = vmul.f32 %v187, 0.00390625
      %v189 = vlog2.pop %v188
      %v190 = vmul.f32 %v189, 0.6931472
      %v191 = vsub.f32 0.0, %v190
      %v192 = vadd.f32 %v181, 1.0
      %v193 = vmul.f32 %v192, 0.00390625
      %v194 = vlog2.pop %v193
      %v195 = vmul.f32 %v194, 0.6931472
      %v196 = vsub.f32 0.0, %v195
      %s197 = sld [smem:[#allocation3 + $0x6]]
      %s198 = sld [smem:[#allocation3 + $0x7]]
      %s199 = sld [smem:[#allocation3 + $0x8]]
      %s200 = sld [smem:[#allocation3 + $0x9]]
      %s201 = sld [smem:[#allocation3 + $0xa]]
      %s202 = sld [smem:[#allocation3 + $0xb]]
      %s203 = sld [smem:[#allocation3 + $0xc]]
      %s204 = sld [smem:[#allocation3 + $0xd]]
      %s205 = sld [smem:[#allocation3 + $0xe]]
      %v206 = vstv %s197
      %v207 = vmul.f32 %v186, %v206
      %v208 = vstv %s200
      %v209 = vmul.f32 %v191, %v208
      %v210 = vadd.f32 %v207, %v209
      %v211 = vstv %s203
      %v212 = vmul.f32 %v196, %v211
      %v213 = vadd.f32 %v210, %v212
      %v214 = vstv %s198
      %v215 = vmul.f32 %v186, %v214
      %v216 = vstv %s201
      %v217 = vmul.f32 %v191, %v216
      %v218 = vadd.f32 %v215, %v217
      %v219 = vstv %s204
      %v220 = vmul.f32 %v196, %v219
      %v221 = vadd.f32 %v218, %v220
      %v222 = vstv %s199
      %v223 = vmul.f32 %v186, %v222
      %v224 = vstv %s202
      %v225 = vmul.f32 %v191, %v224
      %v226 = vadd.f32 %v223, %v225
      %v227 = vstv %s205
      %v228 = vmul.f32 %v196, %v227
      %v229 = vadd.f32 %v226, %v228
      %v230 = vsub.f32 0.0, %v213
      %v231 = vmul.f32 %v230, 1.442695
      %v232 = vpow.pop %v231
      %v233 = vmul.f32 %v232, 256.0
      %v234 = vsub.f32 %v233, 1.0
      %v235 = vadd.f32 %v234, 0.5
      %v236 = vfloor.f32 %v235
      %v237 = vmax.f32 %v236, 0.0
      %v238 = vmin.f32 %v237, 255.0
      %239 = vst [vmem:[#allocation2] sm:$0xff] %v238
      %v240 = vsub.f32 0.0, %v221
      %v241 = vmul.f32 %v240, 1.442695
      %v242 = vpow.pop %v241
      %v243 = vmul.f32 %v242, 256.0
      %v244 = vsub.f32 %v243, 1.0
      %v245 = vadd.f32 %v244, 0.5
      %v246 = vfloor.f32 %v245
      %v247 = vmax.f32 %v246, 0.0
      %v248 = vmin.f32 %v247, 255.0
      %249 = vst [vmem:[%s165] sm:$0xff] %v248
      %v250 = vsub.f32 0.0, %v229
      %v251 = vmul.f32 %v250, 1.442695
      %v252 = vpow.pop %v251
      %v253 = vmul.f32 %v252, 256.0
      %v254 = vsub.f32 %v253, 1.0
      %v255 = vadd.f32 %v254, 0.5
      %v256 = vfloor.f32 %v255
      %v257 = vmax.f32 %v256, 0.0
      %v258 = vmin.f32 %v257, 255.0
      %259 = vst [vmem:[%s172] sm:$0xff] %v258
    $region21: #{tpu_custom_call.1} parent=1 // pred_fallthru
      _
    %s260 = sld [smem:[#allocation3 + $0xf]]
    %p261 = scmp.gt.f32.partialorder %s260, 0.5
    // Predicated region
    $region22: #{tpu_custom_call.1} parent=1 // pred_check
      %p262 = pneg %p261
    $region23: #{tpu_custom_call.1} parent=1 // pred_check_branch
      %264 = sbr.rel (%p262) target = $region25
    $region24: #{tpu_custom_call.1} parent=1 // pred_region
      %s265 = sld [smem:[#allocation3 + $0x10]]
      %s266 = sld [smem:[#allocation3 + $0x11]]
      %s267 = sld [smem:[#allocation3 + $0x12]]
      %v268 = vld [vmem:[#allocation2] sm:$0xff]
      %v269 = vld [vmem:[%s165] sm:$0xff]
      %v270 = vld [vmem:[%s172] sm:$0xff]
      %v271 = vmul.f32 %v268, 0.003921569
      %v272 = vadd.f32 %v271, 0.055
      %v273 = vmul.f32 %v272, 0.9478673
      %v274 = vmax.f32 %v273, 1e-08
      %v275 = vlog2.pop %v274
      %v276 = vmul.f32 %v275, 0.6931472
      %v277 = vmul.f32 %v276, 2.4
      %v278 = vmul.f32 %v277, 1.442695
      %v279 = vpow.pop %v278
      %vm280 = vcmp.le.f32.partialorder %v271, 0.04045
      %v281 = vmul.f32 %v271, 0.07739938
      %v282 = vsel %vm280, %v281, %v279
      %v283 = vmul.f32 %v269, 0.003921569
      %v284 = vadd.f32 %v283, 0.055
      %v285 = vmul.f32 %v284, 0.9478673
      %v286 = vmax.f32 %v285, 1e-08
      %v287 = vlog2.pop %v286
      %v288 = vmul.f32 %v287, 0.6931472
      %v289 = vmul.f32 %v288, 2.4
      %v290 = vmul.f32 %v289, 1.442695
      %v291 = vpow.pop %v290
      %vm292 = vcmp.le.f32.partialorder %v283, 0.04045
      %v293 = vmul.f32 %v283, 0.07739938
      %v294 = vsel %vm292, %v293, %v291
      %v295 = vmul.f32 %v270, 0.003921569
      %v296 = vadd.f32 %v295, 0.055
      %v297 = vmul.f32 %v296, 0.9478673
      %v298 = vmax.f32 %v297, 1e-08
      %v299 = vlog2.pop %v298
      %v300 = vmul.f32 %v299, 0.6931472
      %v301 = vmul.f32 %v300, 2.4
      %v302 = vmul.f32 %v301, 1.442695
      %v303 = vpow.pop %v302
      %vm304 = vcmp.le.f32.partialorder %v295, 0.04045
      %v305 = vmul.f32 %v295, 0.07739938
      %v306 = vsel %vm304, %v305, %v303
      %v307 = vmul.f32 %v282, 0.412453
      %v308 = vmul.f32 %v294, 0.35758
      %v309 = vadd.f32 %v307, %v308
      %v310 = vmul.f32 %v306, 0.180423
      %v311 = vadd.f32 %v309, %v310
      %v312 = vmul.f32 %v282, 0.212671
      %v313 = vmul.f32 %v294, 0.71516
      %v314 = vadd.f32 %v312, %v313
      %v315 = vmul.f32 %v306, 0.072169
      %v316 = vadd.f32 %v314, %v315
      %v317 = vmul.f32 %v282, 0.019334
      %v318 = vmul.f32 %v294, 0.119193
      %v319 = vadd.f32 %v317, %v318
      %v320 = vmul.f32 %v306, 0.950227
      %v321 = vadd.f32 %v319, %v320
      %v322 = vmul.f32 %v311, 1.0521265
      %v323 = vmul.f32 %v321, 0.9184811
      %v324 = vmax.f32 %v322, 1e-08
      %v325 = vlog2.pop %v324
      %v326 = vmul.f32 %v325, 0.6931472
      %v327 = vmul.f32 %v326, 0.33333334
      %v328 = vmul.f32 %v327, 1.442695
      %v329 = vpow.pop %v328
      %vm330 = vcmp.gt.f32.partialorder %v322, 0.008856
      %v331 = vmul.f32 %v322, 7.787
      %v332 = vadd.f32 %v331, 0.13793103
      %v333 = vsel %vm330, %v329, %v332
      %v334 = vmax.f32 %v316, 1e-08
      %v335 = vlog2.pop %v334
      %v336 = vmul.f32 %v335, 0.6931472
      %v337 = vmul.f32 %v336, 0.33333334
      %v338 = vmul.f32 %v337, 1.442695
      %v339 = vpow.pop %v338
      %vm340 = vcmp.gt.f32.partialorder %v316, 0.008856
      %v341 = vmul.f32 %v316, 7.787
      %v342 = vadd.f32 %v341, 0.13793103
      %v343 = vsel %vm340, %v339, %v342
      %v344 = vmax.f32 %v323, 1e-08
      %v345 = vlog2.pop %v344
      %v346 = vmul.f32 %v345, 0.6931472
      %v347 = vmul.f32 %v346, 0.33333334
      %v348 = vmul.f32 %v347, 1.442695
      %v349 = vpow.pop %v348
      %vm350 = vcmp.gt.f32.partialorder %v323, 0.008856
      %v351 = vmul.f32 %v323, 7.787
      %v352 = vadd.f32 %v351, 0.13793103
      %v353 = vsel %vm350, %v349, %v352
      %v354 = vmul.f32 %v343, 116.0
      %v355 = vsub.f32 %v354, 16.0
      %v356 = vsub.f32 %v333, %v343
      %v357 = vmul.f32 %v356, 500.0
      %v358 = vsub.f32 %v343, %v353
      %v359 = vmul.f32 %v358, 200.0
      %v360 = vstv %s265
      %v361 = vadd.f32 %v355, %v360
      %v362 = vmax.f32 %v361, 0.0
      %v363 = vmin.f32 %v362, 100.0
      %v364 = vstv %s266
      %v365 = vadd.f32 %v357, %v364
      %v366 = vstv %s267
      %v367 = vadd.f32 %v359, %v366
      %v368 = vadd.f32 %v363, 16.0
      %v369 = vmul.f32 %v368, 0.00862069
      %v370 = vmul.f32 %v365, 0.002
      %v371 = vadd.f32 %v369, %v370
      %v372 = vmul.f32 %v367, 0.005
      %v373 = vsub.f32 %v369, %v372
      %v374 = vmul.f32 %v371, %v371
      %v375 = vmul.f32 %v374, %v371
      %vm376 = vcmp.gt.f32.partialorder %v375, 0.008856
      %v377 = vsub.f32 %v371, 0.13793103
      %v378 = vmul.f32 %v377, 0.12841916
      %v379 = vsel %vm376, %v375, %v378
      %v380 = vmul.f32 %v379, 0.950456
      %v381 = vmul.f32 %v369, %v369
      %v382 = vmul.f32 %v381, %v369
      %vm383 = vcmp.gt.f32.partialorder %v382, 0.008856
      %v384 = vsub.f32 %v369, 0.13793103
      %v385 = vmul.f32 %v384, 0.12841916
      %v386 = vsel %vm383, %v382, %v385
      %v387 = vmul.f32 %v373, %v373
      %v388 = vmul.f32 %v387, %v373
      %vm389 = vcmp.gt.f32.partialorder %v388, 0.008856
      %v390 = vsub.f32 %v373, 0.13793103
      %v391 = vmul.f32 %v390, 0.12841916
      %v392 = vsel %vm389, %v388, %v391
      %v393 = vmul.f32 %v392, 1.088754
      %v394 = vmul.f32 %v380, 3.240479
      %v395 = vmul.f32 %v386, 1.53715
      %v396 = vsub.f32 %v394, %v395
      %v397 = vmul.f32 %v393, 0.498535
      %v398 = vsub.f32 %v396, %v397
      %v399 = vmul.f32 %v380, -0.969256
      %v400 = vmul.f32 %v386, 1.875992
      %v401 = vadd.f32 %v399, %v400
      %v402 = vmul.f32 %v393, 0.041556
      %v403 = vadd.f32 %v401, %v402
      %v404 = vmul.f32 %v380, 0.055648
      %v405 = vmul.f32 %v386, 0.204043
      %v406 = vsub.f32 %v404, %v405
      %v407 = vmul.f32 %v393, 1.057311
      %v408 = vadd.f32 %v406, %v407
      %v409 = vmax.f32 %v398, 0.0
      %v410 = vmin.f32 %v409, 1.0
      %v411 = vmax.f32 %v410, 1e-08
      %v412 = vlog2.pop %v411
      %v413 = vmul.f32 %v412, 0.6931472
      %v414 = vmul.f32 %v413, 0.41666666
      %v415 = vmul.f32 %v414, 1.442695
      %v416 = vpow.pop %v415
      %v417 = vmul.f32 %v416, 1.055
      %v418 = vsub.f32 %v417, 0.055
      %vm419 = vcmp.le.f32.partialorder %v410, 0.0031308
      %v420 = vmul.f32 %v410, 12.92
      %v421 = vsel %vm419, %v420, %v418
      %v422 = vmul.f32 %v421, 255.0
      %v423 = vadd.f32 %v422, 0.5
      %v424 = vfloor.f32 %v423
      %v425 = vmax.f32 %v424, 0.0
      %v426 = vmin.f32 %v425, 255.0
      %427 = vst [vmem:[#allocation2] sm:$0xff] %v426
      %v428 = vmax.f32 %v403, 0.0
      %v429 = vmin.f32 %v428, 1.0
      %v430 = vmax.f32 %v429, 1e-08
      %v431 = vlog2.pop %v430
      %v432 = vmul.f32 %v431, 0.6931472
      %v433 = vmul.f32 %v432, 0.41666666
      %v434 = vmul.f32 %v433, 1.442695
      %v435 = vpow.pop %v434
      %v436 = vmul.f32 %v435, 1.055
      %v437 = vsub.f32 %v436, 0.055
      %vm438 = vcmp.le.f32.partialorder %v429, 0.0031308
      %v439 = vmul.f32 %v429, 12.92
      %v440 = vsel %vm438, %v439, %v437
      %v441 = vmul.f32 %v440, 255.0
      %v442 = vadd.f32 %v441, 0.5
      %v443 = vfloor.f32 %v442
      %v444 = vmax.f32 %v443, 0.0
      %v445 = vmin.f32 %v444, 255.0
      %446 = vst [vmem:[%s165] sm:$0xff] %v445
      %v447 = vmax.f32 %v408, 0.0
      %v448 = vmin.f32 %v447, 1.0
      %v449 = vmax.f32 %v448, 1e-08
      %v450 = vlog2.pop %v449
      %v451 = vmul.f32 %v450, 0.6931472
      %v452 = vmul.f32 %v451, 0.41666666
      %v453 = vmul.f32 %v452, 1.442695
      %v454 = vpow.pop %v453
      %v455 = vmul.f32 %v454, 1.055
      %v456 = vsub.f32 %v455, 0.055
      %vm457 = vcmp.le.f32.partialorder %v448, 0.0031308
      %v458 = vmul.f32 %v448, 12.92
      %v459 = vsel %vm457, %v458, %v456
      %v460 = vmul.f32 %v459, 255.0
      %v461 = vadd.f32 %v460, 0.5
      %v462 = vfloor.f32 %v461
      %v463 = vmax.f32 %v462, 0.0
      %v464 = vmin.f32 %v463, 255.0
      %465 = vst [vmem:[%s172] sm:$0xff] %v464
    $region25: #{tpu_custom_call.1} parent=1 // pred_fallthru
      _
    %v466 = vld [vmem:[#allocation2] sm:$0xff]
    %v467 = vld [vmem:[#allocation2 + $0x8] sm:$0xff]
    %v468 = vld [vmem:[#allocation2 + $0x10] sm:$0xff]
    %v469 = vmul.f32 %v466, 0.003921569
    %v470 = vmul.f32 %v467, 0.003921569
    %v471 = vmul.f32 %v468, 0.003921569
    %472 = vst [vmem:[#allocation8] sm:$0xff] %v469
    %473 = vst [vmem:[#allocation8 + $0x8] sm:$0xff] %v470
    %474 = vst [vmem:[#allocation8 + $0x10] sm:$0xff] %v471
    // Predicated region
    $region26: #{tpu_custom_call.1} parent=1 // pred_check
      _
    $region27: #{tpu_custom_call.1} parent=1 // pred_check_branch
      %476 = sbr.rel (0) target = $region29
    $region28: #{tpu_custom_call.1} parent=1 // pred_region
      %s478 = ssub.s32 384, 384
      %479 = vsyncadd [#allocation5], %s478
      %s480 = sshll.u32 [#allocation8], 4
      %s481 = int_to_ptr.vmem [resolvable:$true] %s480
      %486 = dma.vmem_to_hbm [thread:$0]  %s481, 384, %s2, [#allocation5], 128, 128, 8
    $region29: #{tpu_custom_call.1} parent=1 // pred_fallthru
      _
    // Predicated region
    $region30: #{tpu_custom_call.1} parent=1 // pred_check
      _
    $region31: #{tpu_custom_call.1} parent=1 // pred_check_branch
      %488 = sbr.rel (0) target = $region33
    $region32: #{tpu_custom_call.1} parent=1 // pred_region
      %489 = dma.done [#allocation5], 384
    $region33: #{tpu_custom_call.1} parent=1 // pred_fallthru
      _
    %490 = vsyncpa [#allocation4], 1
    %491 = vsyncpa [#allocation5], 1
    %492 = vsyncpa [#allocation6], 1

</llo_original>
